<compile_context>
chip_gen: v7x
topology: tpu7x:2x2x1
jax: 0.10.0
libtpu: 0.0.40
codegen_flags: <defaults>
</compile_context>

<pallas_src>
import jax
import jax.numpy as jnp
import numpy as np
from jax import lax
from jax.experimental import pallas as pl
from jax.experimental.pallas import tpu as pltpu


# ----------------------------------------------------------------------------
# Glue helpers (plain JAX): BN folding and relative positional embeddings
# ----------------------------------------------------------------------------
def _fold_bn(gamma, beta, mean, var, eps=1e-5):
    """Fold eval-mode BatchNorm into per-channel (scale, bias)."""
    scale = gamma / jnp.sqrt(var + eps)
    bias = beta - mean * scale
    return scale, bias


def _relative_embeddings(relative, dim, dim_kq, dim_v):
    """Relative2DPosEncQKV.forward (index_select gather) in plain JAX."""
    q_index = jnp.arange(dim)[None, :]
    k_index = jnp.arange(dim)[:, None]
    rel_idx = (k_index - q_index + dim - 1).reshape(-1)          # [dim*dim]
    all_emb = jnp.take(relative, rel_idx, axis=1)                # [C, dim*dim]
    all_emb = all_emb.reshape(relative.shape[0], dim, dim)       # [C, dim, dim]
    r_q = all_emb[:dim_kq]
    r_k = all_emb[dim_kq:2 * dim_kq]
    r_v = all_emb[2 * dim_kq:]
    return r_q, r_k, r_v


# ----------------------------------------------------------------------------
# Pallas kernel: one batch per grid point, all heads fused
# ----------------------------------------------------------------------------
def _cross_axial_attention_kernel(
        x_ref, skip_ref,
        wqk_ref, sqk_ref, bqk_ref,
        wv_ref, sv_ref, bv_ref,
        rq_ref, rk_ref, rv_ref,
        an_s_ref,                 # SMEM: [heads, 3] attention_norm scales
        on_kv_ref, on_b_ref,      # VMEM: [heads*dim_v, 1] out_norm kv-scale / summed bias
        o_ref):
    heads = an_s_ref.shape[0]
    dim_kq = rq_ref.shape[0]
    dim_v = rv_ref.shape[0]
    qkc = 2 * dim_kq

    x = x_ref[0]        # [C_in, D]
    skip = skip_ref[0]  # [C_skip, D]

    # Fused 1x1 Conv1d across all heads (channel matmul; spatial axis on
    # sublanes, output channels lane-dense) + folded eval-mode BN1d.
    qk_t = lax.dot_general(x, wqk_ref[...], (((0,), (1,)), ((), ())),
                           preferred_element_type=jnp.float32)
    qk_t = qk_t * sqk_ref[...] + bqk_ref[...]        # [D, heads*2*dim_kq]
    v_t = lax.dot_general(skip, wv_ref[...], (((0,), (1,)), ((), ())),
                          preferred_element_type=jnp.float32)
    v_t = v_t * sv_ref[...] + bv_ref[...]            # [D, heads*dim_v] (out_norm scale folded)

    for h in range(heads):
        q_t = qk_t[:, h * qkc:h * qkc + dim_kq]          # q_t[d, i] = q[i, d]
        k_t = qk_t[:, h * qkc + dim_kq:(h + 1) * qkc]    # k_t[j, i] = k[i, j]
        v_h = v_t[:, h * dim_v:(h + 1) * dim_v]          # v_h[j, i] = v[i, j]

        a_qr = an_s_ref[h, 0]
        a_kr = an_s_ref[h, 1]
        a_dots = an_s_ref[h, 2]

        # Fold attention_norm scales into the (tiny) q/k projections.
        q_qr = q_t * a_qr
        k_kr = k_t * a_kr
        q_d = q_t * a_dots

        # dots[d, j] = sum_i q[i, d] * k[i, j]
        logits = lax.dot_general(q_d, k_t, (((1,), (1,)), ((), ())),
                                 preferred_element_type=jnp.float32)
        # + qr[d, j] + kr[d, j]  (relative-position terms, VPU FMAs)
        for i in range(dim_kq):
            logits = (logits
                      + q_qr[:, i:i + 1] * rq_ref[i]
                      + k_kr[:, i:i + 1] * rk_ref[i])

        # softmax over j (attention_norm biases are constant over j -> dropped)
        m = jnp.max(logits, axis=-1, keepdims=True)
        e = jnp.exp(logits - m)
        inv = pl.reciprocal(jnp.sum(e, axis=-1, keepdims=True), approx=True)
        attn = e * inv                                   # [D(d), D(j)]

        # out[i, d] = sum_j attn[d, j] * v[i, j]   (out_norm 'out' scale pre-folded)
        out_h = lax.dot_general(v_h, attn, (((0,), (1,)), ((), ())),
                                preferred_element_type=jnp.float32)   # [dim_v, D]
        # kv[i, d] = sum_j attn[d, j] * r_v[i, d, j]
        kv_h = jnp.sum(attn[None, :, :] * rv_ref[...], axis=-1)       # [dim_v, D]

        res = (kv_h * on_kv_ref[h * dim_v:(h + 1) * dim_v, :]
               + out_h
               + on_b_ref[h * dim_v:(h + 1) * dim_v, :])
        o_ref[0, h * dim_v:(h + 1) * dim_v, :] = res.astype(o_ref.dtype)


# ----------------------------------------------------------------------------
# Wrapper: parameter rearrangement / folding (glue) + pallas_call
# ----------------------------------------------------------------------------
def cross_axial_attention(x_in, skip, params, *, dim, heads, dim_head_kq):
    B, C_in, D = x_in.shape
    _, C_skip, _ = skip.shape
    assert D == dim
    dim_head_v = C_skip // heads
    qk_channels = 2 * dim_head_kq
    v_channels = dim_head_v

    # Fold eval-mode BatchNorms into scale/bias.
    s_kq, b_kq = _fold_bn(params['bn_kq_gamma'], params['bn_kq_beta'],
                          params['bn_kq_mean'], params['bn_kq_var'])
    s_v, b_v = _fold_bn(params['bn_v_gamma'], params['bn_v_beta'],
                        params['bn_v_mean'], params['bn_v_var'])
    s_an, _b_an = _fold_bn(params['an_gamma'], params['an_beta'],
                           params['an_mean'], params['an_var'])
    s_on, b_on = _fold_bn(params['on_gamma'], params['on_beta'],
                          params['on_mean'], params['on_var'])

    # Conv output channel index is c = q*heads + h  ->  reorder to head-major
    # (h*qk_channels + q) so each head's projection columns are contiguous.
    wqk = params['w_kq'].reshape(qk_channels, heads, C_in).transpose(1, 0, 2) \
                        .reshape(heads * qk_channels, C_in)
    sqk = s_kq.reshape(qk_channels, heads).T.reshape(1, heads * qk_channels)
    bqk = b_kq.reshape(qk_channels, heads).T.reshape(1, heads * qk_channels)

    wv = params['w_v'].reshape(v_channels, heads, C_skip).transpose(1, 0, 2) \
                      .reshape(heads * v_channels, C_skip)
    sv = s_v.reshape(v_channels, heads).T.reshape(heads * v_channels)
    bv = b_v.reshape(v_channels, heads).T.reshape(heads * v_channels)

    # out_norm channel index is c = n*(H*dim_v) + h*dim_v + i  (n=0: kv, n=1: out).
    on_s2 = s_on.reshape(2, heads * v_channels)
    on_b2 = b_on.reshape(2, heads * v_channels)
    # Fold the 'out'-branch out_norm scale into the v projection (exact: a
    # per-channel scalar commutes with the attention matmul).
    sv = (sv * on_s2[1]).reshape(1, heads * v_channels)
    bv = (bv * on_s2[1]).reshape(1, heads * v_channels)
    on_kv = on_s2[0].reshape(heads * v_channels, 1)
    on_bias = (on_b2[0] + on_b2[1]).reshape(heads * v_channels, 1)

    # attention_norm channel index is c = h*3 + n; only the scales are needed
    # in-kernel (biases are softmax-invariant).
    an_s = s_an.reshape(heads, 3)

    r_q, r_k, r_v = _relative_embeddings(params['relative'], dim,
                                         dim_head_kq, dim_head_v)

    in_specs = [
        pl.BlockSpec((1, C_in, D), lambda b: (b, 0, 0)),                   # x_in
        pl.BlockSpec((1, C_skip, D), lambda b: (b, 0, 0)),                 # skip
        pl.BlockSpec((heads * qk_channels, C_in), lambda b: (0, 0)),       # wqk
        pl.BlockSpec((1, heads * qk_channels), lambda b: (0, 0)),          # sqk
        pl.BlockSpec((1, heads * qk_channels), lambda b: (0, 0)),          # bqk
        pl.BlockSpec((heads * v_channels, C_skip), lambda b: (0, 0)),      # wv
        pl.BlockSpec((1, heads * v_channels), lambda b: (0, 0)),           # sv
        pl.BlockSpec((1, heads * v_channels), lambda b: (0, 0)),           # bv
        pl.BlockSpec((dim_head_kq, D, D), lambda b: (0, 0, 0)),            # r_q
        pl.BlockSpec((dim_head_kq, D, D), lambda b: (0, 0, 0)),            # r_k
        pl.BlockSpec((dim_head_v, D, D), lambda b: (0, 0, 0)),             # r_v
        pl.BlockSpec(memory_space=pltpu.MemorySpace.SMEM),                 # an_s
        pl.BlockSpec((heads * v_channels, 1), lambda b: (0, 0)),           # on_kv
        pl.BlockSpec((heads * v_channels, 1), lambda b: (0, 0)),           # on_bias
    ]

    # Advisory cost estimate for XLA's scheduler.
    flops = int(B * (2 * D * C_in * heads * qk_channels
                     + 2 * D * C_skip * heads * v_channels
                     + heads * D * D * (6 * dim_head_kq + 4 * v_channels)))
    transcendentals = int(B * heads * D * D)
    bytes_accessed = int(4 * (B * (C_in + 2 * C_skip) * D
                              + heads * (qk_channels * C_in + v_channels * C_skip)
                              + (2 * dim_head_kq + v_channels) * D * D))

    out = pl.pallas_call(
        _cross_axial_attention_kernel,
        out_shape=jax.ShapeDtypeStruct((B, C_skip, D), jnp.float32),
        grid=(B,),
        in_specs=in_specs,
        out_specs=pl.BlockSpec((1, C_skip, D), lambda b: (b, 0, 0)),
        compiler_params=pltpu.CompilerParams(
            dimension_semantics=("parallel",)),
        cost_estimate=pl.CostEstimate(flops=flops,
                                      transcendentals=transcendentals,
                                      bytes_accessed=bytes_accessed),
    )(x_in, skip, wqk, sqk, bqk, wv, sv, bv, r_q, r_k, r_v,
      an_s, on_kv, on_bias)

    # Output is already [B, heads*dim_v, D] with D lane-dense; no transpose.
    return out


# ----------------------------------------------------------------------------
# Pure-JAX reference mirroring the PyTorch forward (eval-mode BN)
# ----------------------------------------------------------------------------
def cross_axial_attention_reference(x_in, skip, params, *, dim, heads,
                                    dim_head_kq):
    B, C_in, D = x_in.shape
    C_skip = skip.shape[1]
    dim_head_v = C_skip // heads
    qk_channels = 2 * dim_head_kq
    v_channels = dim_head_v
    hp = lax.Precision.HIGHEST

    s_kq, b_kq = _fold_bn(params['bn_kq_gamma'], params['bn_kq_beta'],
                          params['bn_kq_mean'], params['bn_kq_var'])
    s_v, b_v = _fold_bn(params['bn_v_gamma'], params['bn_v_beta'],
                        params['bn_v_mean'], params['bn_v_var'])
    s_an, b_an = _fold_bn(params['an_gamma'], params['an_beta'],
                          params['an_mean'], params['an_var'])
    s_on, b_on = _fold_bn(params['on_gamma'], params['on_beta'],
                          params['on_mean'], params['on_var'])

    qk = jnp.einsum('oc,bcd->bod', params['w_kq'], x_in, precision=hp)
    qk = qk * s_kq[None, :, None] + b_kq[None, :, None]
    v = jnp.einsum('oc,bcd->bod', params['w_v'], skip, precision=hp)
    v = v * s_v[None, :, None] + b_v[None, :, None]

    qk = qk.reshape(B, qk_channels, heads, D).transpose(0, 2, 1, 3)
    v = v.reshape(B, v_channels, heads, D).transpose(0, 2, 1, 3)
    q, k = qk[:, :, :dim_head_kq], qk[:, :, dim_head_kq:]

    r_q, r_k, r_v = _relative_embeddings(params['relative'], dim,
                                         dim_head_kq, dim_head_v)
    qr = jnp.einsum('bhid,idj->bhdj', q, r_q, precision=hp)
    kr = jnp.einsum('bhid,idj->bhdj', k, r_k, precision=hp)
    dots = jnp.einsum('bhid,bhij->bhdj', q, k, precision=hp)

    an_s = s_an.reshape(heads, 3)
    an_b = b_an.reshape(heads, 3)
    logits = (qr * an_s[None, :, 0, None, None] + an_b[None, :, 0, None, None]
              + kr * an_s[None, :, 1, None, None] + an_b[None, :, 1, None, None]
              + dots * an_s[None, :, 2, None, None] + an_b[None, :, 2, None, None])
    attn = jax.nn.softmax(logits, axis=-1)

    out = jnp.einsum('bhdj,bhij->bhid', attn, v, precision=hp)
    kv = jnp.einsum('bhdj,idj->bhid', attn, r_v, precision=hp)

    on_s = s_on.reshape(2, heads, dim_head_v)
    on_b = b_on.reshape(2, heads, dim_head_v)
    kv_n = kv * on_s[0][None, :, :, None] + on_b[0][None, :, :, None]
    out_n = out * on_s[1][None, :, :, None] + on_b[1][None, :, :, None]
    return (kv_n + out_n).reshape(B, heads * dim_head_v, D)


# ----------------------------------------------------------------------------
if __name__ == "__main__":
    B = 2
    dim = 16                    # spatial / sequence axis ("d")
    in_channels = 16
    in_skip_channels = 16
    heads = 2
    dim_head_kq = 4
    dim_head_v = in_skip_channels // heads        # 8
    qk_channels = 2 * dim_head_kq                 # 8
    v_channels = dim_head_v                       # 8
    qkv_chan = 2 * dim_head_kq + dim_head_v       # 16

    f32 = jnp.float32
    key = jax.random.PRNGKey(0)
    keys = jax.random.split(key, 16)

    params = dict(
        w_kq=0.1 * jax.random.normal(keys[0], (heads * qk_channels, in_channels), f32),
        w_v=0.1 * jax.random.normal(keys[1], (heads * v_channels, in_skip_channels), f32),
        relative=0.1 * jax.random.normal(keys[2], (qkv_chan, 2 * dim - 1), f32),
        bn_kq_gamma=1.0 + 0.1 * jax.random.normal(keys[3], (heads * qk_channels,), f32),
        bn_kq_beta=0.1 * jax.random.normal(keys[4], (heads * qk_channels,), f32),
        bn_kq_mean=0.1 * jax.random.normal(keys[5], (heads * qk_channels,), f32),
        bn_kq_var=0.5 + jax.random.uniform(keys[6], (heads * qk_channels,), f32),
        bn_v_gamma=1.0 + 0.1 * jax.random.normal(keys[7], (heads * v_channels,), f32),
        bn_v_beta=0.1 * jax.random.normal(keys[8], (heads * v_channels,), f32),
        bn_v_mean=0.1 * jax.random.normal(keys[9], (heads * v_channels,), f32),
        bn_v_var=0.5 + jax.random.uniform(keys[10], (heads * v_channels,), f32),
        an_gamma=1.0 + 0.1 * jax.random.normal(keys[11], (heads * 3,), f32),
        an_beta=0.1 * jax.random.normal(keys[12], (heads * 3,), f32),
        an_mean=jnp.zeros((heads * 3,), f32),
        an_var=jnp.ones((heads * 3,), f32),
        on_gamma=1.0 + 0.1 * jax.random.normal(keys[13], (2 * in_skip_channels,), f32),
        on_beta=0.1 * jax.random.normal(keys[14], (2 * in_skip_channels,), f32),
        on_mean=jnp.zeros((2 * in_skip_channels,), f32),
        on_var=jnp.ones((2 * in_skip_channels,), f32),
    )

    kx, ks = jax.random.split(keys[15])
    x_in = jax.random.normal(kx, (B, in_channels, dim), f32)
    skip = jax.random.normal(ks, (B, in_skip_channels, dim), f32)

    out = cross_axial_attention(x_in, skip, params, dim=dim, heads=heads,
                                dim_head_kq=dim_head_kq)
    out = jax.block_until_ready(out)

    ref = cross_axial_attention_reference(x_in, skip, params, dim=dim,
                                          heads=heads, dim_head_kq=dim_head_kq)
    assert out.shape == (B, in_skip_channels, dim), out.shape
    np.testing.assert_allclose(np.asarray(out), np.asarray(ref),
                               atol=5e-2, rtol=5e-2)
    print("KERNEL_OK")
</pallas_src>

<mosaic_0001>
module attributes {stable_mosaic.version = 11 : i64} {
  func.func @_cross_axial_attention_kernel(%arg0: i32, %arg1: memref<1x16x16xf32, #tpu.memory_space<vmem>>, %arg2: memref<1x16x16xf32, #tpu.memory_space<vmem>>, %arg3: memref<16x16xf32, #tpu.memory_space<vmem>>, %arg4: memref<1x16xf32, #tpu.memory_space<vmem>>, %arg5: memref<1x16xf32, #tpu.memory_space<vmem>>, %arg6: memref<16x16xf32, #tpu.memory_space<vmem>>, %arg7: memref<1x16xf32, #tpu.memory_space<vmem>>, %arg8: memref<1x16xf32, #tpu.memory_space<vmem>>, %arg9: memref<4x16x16xf32, #tpu.memory_space<vmem>>, %arg10: memref<4x16x16xf32, #tpu.memory_space<vmem>>, %arg11: memref<8x16x16xf32, #tpu.memory_space<vmem>>, %arg12: memref<2x3xf32, #tpu.memory_space<smem>>, %arg13: memref<16x1xf32, #tpu.memory_space<vmem>>, %arg14: memref<16x1xf32, #tpu.memory_space<vmem>>, %arg15: memref<1x16x16xf32, #tpu.memory_space<vmem>>) attributes {dimension_semantics = [#tpu.dimension_semantics<parallel>], iteration_bounds = array<i64: 2>, scalar_prefetch = 0 : i64, scratch_operands = 0 : i64, tpu.core_type = #tpu.core_type<tc>, window_params = [{transform_indices = @transform_0, window_bounds = array<i64: 1, 16, 16>}, {transform_indices = @transform_1, window_bounds = array<i64: 1, 16, 16>}, {pipeline_mode = #tpu.pipeline_mode<synchronous>, transform_indices = @transform_2, window_bounds = array<i64: 16, 16>}, {pipeline_mode = #tpu.pipeline_mode<synchronous>, transform_indices = @transform_3, window_bounds = array<i64: 1, 16>}, {pipeline_mode = #tpu.pipeline_mode<synchronous>, transform_indices = @transform_4, window_bounds = array<i64: 1, 16>}, {pipeline_mode = #tpu.pipeline_mode<synchronous>, transform_indices = @transform_5, window_bounds = array<i64: 16, 16>}, {pipeline_mode = #tpu.pipeline_mode<synchronous>, transform_indices = @transform_6, window_bounds = array<i64: 1, 16>}, {pipeline_mode = #tpu.pipeline_mode<synchronous>, transform_indices = @transform_7, window_bounds = array<i64: 1, 16>}, {pipeline_mode = #tpu.pipeline_mode<synchronous>, transform_indices = @transform_8, window_bounds = array<i64: 4, 16, 16>}, {pipeline_mode = #tpu.pipeline_mode<synchronous>, transform_indices = @transform_9, window_bounds = array<i64: 4, 16, 16>}, {pipeline_mode = #tpu.pipeline_mode<synchronous>, transform_indices = @transform_10, window_bounds = array<i64: 8, 16, 16>}, {transform_indices = @transform_11, window_bounds = array<i64: 2, 3>}, {pipeline_mode = #tpu.pipeline_mode<synchronous>, transform_indices = @transform_12, window_bounds = array<i64: 16, 1>}, {pipeline_mode = #tpu.pipeline_mode<synchronous>, transform_indices = @transform_13, window_bounds = array<i64: 16, 1>}, {transform_indices = @transform_14, window_bounds = array<i64: 1, 16, 16>}]} {
    %c0 = arith.constant 0 : index
    %c0_0 = arith.constant 0 : index
    %c0_1 = arith.constant 0 : index
    %0 = vector.load %arg1[%c0, %c0_0, %c0_1] : memref<1x16x16xf32, #tpu.memory_space<vmem>>, vector<1x16x16xf32>
    %1 = vector.shape_cast %0 : vector<1x16x16xf32> to vector<16x16xf32>
    %c0_2 = arith.constant 0 : index
    %c0_3 = arith.constant 0 : index
    %c0_4 = arith.constant 0 : index
    %2 = vector.load %arg2[%c0_2, %c0_3, %c0_4] : memref<1x16x16xf32, #tpu.memory_space<vmem>>, vector<1x16x16xf32>
    %3 = vector.shape_cast %2 : vector<1x16x16xf32> to vector<16x16xf32>
    %c0_5 = arith.constant 0 : index
    %c0_6 = arith.constant 0 : index
    %4 = vector.load %arg3[%c0_5, %c0_6] : memref<16x16xf32, #tpu.memory_space<vmem>>, vector<16x16xf32>
    %cst = arith.constant dense<0.000000e+00> : vector<16x16xf32>
    %5 = tpu.matmul %1, %4, %cst {dimension_numbers = #tpu.dot_dimension_numbers<[0], [1], [1], [0], [0, 1, 1, 0], [], []>} : vector<16x16xf32>, vector<16x16xf32>, vector<16x16xf32> -> vector<16x16xf32>
    %c0_7 = arith.constant 0 : index
    %c0_8 = arith.constant 0 : index
    %6 = vector.load %arg4[%c0_7, %c0_8] : memref<1x16xf32, #tpu.memory_space<vmem>>, vector<1x16xf32>
    %7 = vector.broadcast %6 : vector<1x16xf32> to vector<16x16xf32>
    %8 = arith.mulf %5, %7 : vector<16x16xf32>
    %c0_9 = arith.constant 0 : index
    %c0_10 = arith.constant 0 : index
    %9 = vector.load %arg5[%c0_9, %c0_10] : memref<1x16xf32, #tpu.memory_space<vmem>>, vector<1x16xf32>
    %10 = vector.broadcast %9 : vector<1x16xf32> to vector<16x16xf32>
    %11 = arith.addf %8, %10 : vector<16x16xf32>
    %c0_11 = arith.constant 0 : index
    %c0_12 = arith.constant 0 : index
    %12 = vector.load %arg6[%c0_11, %c0_12] : memref<16x16xf32, #tpu.memory_space<vmem>>, vector<16x16xf32>
    %cst_13 = arith.constant dense<0.000000e+00> : vector<16x16xf32>
    %13 = tpu.matmul %3, %12, %cst_13 {dimension_numbers = #tpu.dot_dimension_numbers<[0], [1], [1], [0], [0, 1, 1, 0], [], []>} : vector<16x16xf32>, vector<16x16xf32>, vector<16x16xf32> -> vector<16x16xf32>
    %c0_14 = arith.constant 0 : index
    %c0_15 = arith.constant 0 : index
    %14 = vector.load %arg7[%c0_14, %c0_15] : memref<1x16xf32, #tpu.memory_space<vmem>>, vector<1x16xf32>
    %15 = vector.broadcast %14 : vector<1x16xf32> to vector<16x16xf32>
    %16 = arith.mulf %13, %15 : vector<16x16xf32>
    %c0_16 = arith.constant 0 : index
    %c0_17 = arith.constant 0 : index
    %17 = vector.load %arg8[%c0_16, %c0_17] : memref<1x16xf32, #tpu.memory_space<vmem>>, vector<1x16xf32>
    %18 = vector.broadcast %17 : vector<1x16xf32> to vector<16x16xf32>
    %19 = arith.addf %16, %18 : vector<16x16xf32>
    %20 = vector.extract_strided_slice %11 {offsets = [0, 0], sizes = [16, 4], strides = [1, 1]} : vector<16x16xf32> to vector<16x4xf32>
    %21 = vector.extract_strided_slice %11 {offsets = [0, 4], sizes = [16, 4], strides = [1, 1]} : vector<16x16xf32> to vector<16x4xf32>
    %22 = vector.extract_strided_slice %19 {offsets = [0, 0], sizes = [16, 8], strides = [1, 1]} : vector<16x16xf32> to vector<16x8xf32>
    %c0_18 = arith.constant 0 : index
    %c0_19 = arith.constant 0 : index
    %23 = memref.load %arg12[%c0_18, %c0_19] : memref<2x3xf32, #tpu.memory_space<smem>>
    %c0_20 = arith.constant 0 : index
    %c1 = arith.constant 1 : index
    %24 = memref.load %arg12[%c0_20, %c1] : memref<2x3xf32, #tpu.memory_space<smem>>
    %c0_21 = arith.constant 0 : index
    %c2 = arith.constant 2 : index
    %25 = memref.load %arg12[%c0_21, %c2] : memref<2x3xf32, #tpu.memory_space<smem>>
    %26 = vector.broadcast %23 : f32 to vector<16x4xf32>
    %27 = arith.mulf %20, %26 : vector<16x4xf32>
    %28 = vector.broadcast %24 : f32 to vector<16x4xf32>
    %29 = arith.mulf %21, %28 : vector<16x4xf32>
    %30 = vector.broadcast %25 : f32 to vector<16x4xf32>
    %31 = arith.mulf %20, %30 : vector<16x4xf32>
    %cst_22 = arith.constant dense<0.000000e+00> : vector<16x16xf32>
    %32 = tpu.matmul %31, %21, %cst_22 {dimension_numbers = #tpu.dot_dimension_numbers<[1], [1], [0], [0], [0, 0, 1, 0], [], []>} : vector<16x4xf32>, vector<16x4xf32>, vector<16x16xf32> -> vector<16x16xf32>
    %33 = vector.extract_strided_slice %27 {offsets = [0, 0], sizes = [16, 1], strides = [1, 1]} : vector<16x4xf32> to vector<16x1xf32>
    %c0_23 = arith.constant 0 : index
    %c0_24 = arith.constant 0 : index
    %c0_25 = arith.constant 0 : index
    %34 = vector.load %arg9[%c0_23, %c0_24, %c0_25] : memref<4x16x16xf32, #tpu.memory_space<vmem>>, vector<1x16x16xf32>
    %35 = vector.shape_cast %34 : vector<1x16x16xf32> to vector<16x16xf32>
    %36 = vector.broadcast %33 : vector<16x1xf32> to vector<16x16xf32>
    %37 = arith.mulf %36, %35 : vector<16x16xf32>
    %38 = arith.addf %32, %37 : vector<16x16xf32>
    %39 = vector.extract_strided_slice %29 {offsets = [0, 0], sizes = [16, 1], strides = [1, 1]} : vector<16x4xf32> to vector<16x1xf32>
    %c0_26 = arith.constant 0 : index
    %c0_27 = arith.constant 0 : index
    %c0_28 = arith.constant 0 : index
    %40 = vector.load %arg10[%c0_26, %c0_27, %c0_28] : memref<4x16x16xf32, #tpu.memory_space<vmem>>, vector<1x16x16xf32>
    %41 = vector.shape_cast %40 : vector<1x16x16xf32> to vector<16x16xf32>
    %42 = vector.broadcast %39 : vector<16x1xf32> to vector<16x16xf32>
    %43 = arith.mulf %42, %41 : vector<16x16xf32>
    %44 = arith.addf %38, %43 : vector<16x16xf32>
    %45 = vector.extract_strided_slice %27 {offsets = [0, 1], sizes = [16, 1], strides = [1, 1]} : vector<16x4xf32> to vector<16x1xf32>
    %c1_29 = arith.constant 1 : index
    %c0_30 = arith.constant 0 : index
    %c0_31 = arith.constant 0 : index
    %46 = vector.load %arg9[%c1_29, %c0_30, %c0_31] : memref<4x16x16xf32, #tpu.memory_space<vmem>>, vector<1x16x16xf32>
    %47 = vector.shape_cast %46 : vector<1x16x16xf32> to vector<16x16xf32>
    %48 = vector.broadcast %45 : vector<16x1xf32> to vector<16x16xf32>
    %49 = arith.mulf %48, %47 : vector<16x16xf32>
    %50 = arith.addf %44, %49 : vector<16x16xf32>
    %51 = vector.extract_strided_slice %29 {offsets = [0, 1], sizes = [16, 1], strides = [1, 1]} : vector<16x4xf32> to vector<16x1xf32>
    %c1_32 = arith.constant 1 : index
    %c0_33 = arith.constant 0 : index
    %c0_34 = arith.constant 0 : index
    %52 = vector.load %arg10[%c1_32, %c0_33, %c0_34] : memref<4x16x16xf32, #tpu.memory_space<vmem>>, vector<1x16x16xf32>
    %53 = vector.shape_cast %52 : vector<1x16x16xf32> to vector<16x16xf32>
    %54 = vector.broadcast %51 : vector<16x1xf32> to vector<16x16xf32>
    %55 = arith.mulf %54, %53 : vector<16x16xf32>
    %56 = arith.addf %50, %55 : vector<16x16xf32>
    %57 = vector.extract_strided_slice %27 {offsets = [0, 2], sizes = [16, 1], strides = [1, 1]} : vector<16x4xf32> to vector<16x1xf32>
    %c2_35 = arith.constant 2 : index
    %c0_36 = arith.constant 0 : index
    %c0_37 = arith.constant 0 : index
    %58 = vector.load %arg9[%c2_35, %c0_36, %c0_37] : memref<4x16x16xf32, #tpu.memory_space<vmem>>, vector<1x16x16xf32>
    %59 = vector.shape_cast %58 : vector<1x16x16xf32> to vector<16x16xf32>
    %60 = vector.broadcast %57 : vector<16x1xf32> to vector<16x16xf32>
    %61 = arith.mulf %60, %59 : vector<16x16xf32>
    %62 = arith.addf %56, %61 : vector<16x16xf32>
    %63 = vector.extract_strided_slice %29 {offsets = [0, 2], sizes = [16, 1], strides = [1, 1]} : vector<16x4xf32> to vector<16x1xf32>
    %c2_38 = arith.constant 2 : index
    %c0_39 = arith.constant 0 : index
    %c0_40 = arith.constant 0 : index
    %64 = vector.load %arg10[%c2_38, %c0_39, %c0_40] : memref<4x16x16xf32, #tpu.memory_space<vmem>>, vector<1x16x16xf32>
    %65 = vector.shape_cast %64 : vector<1x16x16xf32> to vector<16x16xf32>
    %66 = vector.broadcast %63 : vector<16x1xf32> to vector<16x16xf32>
    %67 = arith.mulf %66, %65 : vector<16x16xf32>
    %68 = arith.addf %62, %67 : vector<16x16xf32>
    %69 = vector.extract_strided_slice %27 {offsets = [0, 3], sizes = [16, 1], strides = [1, 1]} : vector<16x4xf32> to vector<16x1xf32>
    %c3 = arith.constant 3 : index
    %c0_41 = arith.constant 0 : index
    %c0_42 = arith.constant 0 : index
    %70 = vector.load %arg9[%c3, %c0_41, %c0_42] : memref<4x16x16xf32, #tpu.memory_space<vmem>>, vector<1x16x16xf32>
    %71 = vector.shape_cast %70 : vector<1x16x16xf32> to vector<16x16xf32>
    %72 = vector.broadcast %69 : vector<16x1xf32> to vector<16x16xf32>
    %73 = arith.mulf %72, %71 : vector<16x16xf32>
    %74 = arith.addf %68, %73 : vector<16x16xf32>
    %75 = vector.extract_strided_slice %29 {offsets = [0, 3], sizes = [16, 1], strides = [1, 1]} : vector<16x4xf32> to vector<16x1xf32>
    %c3_43 = arith.constant 3 : index
    %c0_44 = arith.constant 0 : index
    %c0_45 = arith.constant 0 : index
    %76 = vector.load %arg10[%c3_43, %c0_44, %c0_45] : memref<4x16x16xf32, #tpu.memory_space<vmem>>, vector<1x16x16xf32>
    %77 = vector.shape_cast %76 : vector<1x16x16xf32> to vector<16x16xf32>
    %78 = vector.broadcast %75 : vector<16x1xf32> to vector<16x16xf32>
    %79 = arith.mulf %78, %77 : vector<16x16xf32>
    %80 = arith.addf %74, %79 : vector<16x16xf32>
    %cst_46 = arith.constant dense<0xFF800000> : vector<16xf32>
    %81 = vector.multi_reduction <maximumf>, %80, %cst_46 [1] : vector<16x16xf32> to vector<16xf32>
    %82 = vector.shape_cast %81 : vector<16xf32> to vector<16x1xf32>
    %83 = vector.broadcast %82 : vector<16x1xf32> to vector<16x16xf32>
    %84 = arith.subf %80, %83 : vector<16x16xf32>
    %85 = math.exp %84 : vector<16x16xf32>
    %cst_47 = arith.constant dense<0.000000e+00> : vector<16xf32>
    %86 = vector.multi_reduction <add>, %85, %cst_47 [1] : vector<16x16xf32> to vector<16xf32>
    %87 = vector.shape_cast %86 : vector<16xf32> to vector<16x1xf32>
    %88 = tpu.reciprocal %87 {approx = true} : vector<16x1xf32> -> vector<16x1xf32>
    %89 = vector.broadcast %88 : vector<16x1xf32> to vector<16x16xf32>
    %90 = arith.mulf %85, %89 : vector<16x16xf32>
    %cst_48 = arith.constant dense<0.000000e+00> : vector<8x16xf32>
    %91 = tpu.matmul %22, %90, %cst_48 {dimension_numbers = #tpu.dot_dimension_numbers<[0], [1], [1], [0], [0, 1, 1, 0], [], []>} : vector<16x8xf32>, vector<16x16xf32>, vector<8x16xf32> -> vector<8x16xf32>
    %92 = vector.shape_cast %90 : vector<16x16xf32> to vector<1x16x16xf32>
    %c0_49 = arith.constant 0 : index
    %c0_50 = arith.constant 0 : index
    %c0_51 = arith.constant 0 : index
    %93 = vector.load %arg11[%c0_49, %c0_50, %c0_51] : memref<8x16x16xf32, #tpu.memory_space<vmem>>, vector<8x16x16xf32>
    %94 = vector.broadcast %92 : vector<1x16x16xf32> to vector<8x16x16xf32>
    %95 = arith.mulf %94, %93 : vector<8x16x16xf32>
    %cst_52 = arith.constant dense<0.000000e+00> : vector<8x16xf32>
    %96 = vector.multi_reduction <add>, %95, %cst_52 [2] : vector<8x16x16xf32> to vector<8x16xf32>
    %c0_53 = arith.constant 0 : index
    %c0_54 = arith.constant 0 : index
    %97 = vector.load %arg13[%c0_53, %c0_54] : memref<16x1xf32, #tpu.memory_space<vmem>>, vector<8x1xf32>
    %98 = vector.broadcast %97 : vector<8x1xf32> to vector<8x16xf32>
    %99 = arith.mulf %96, %98 : vector<8x16xf32>
    %100 = arith.addf %99, %91 : vector<8x16xf32>
    %c0_55 = arith.constant 0 : index
    %c0_56 = arith.constant 0 : index
    %101 = vector.load %arg14[%c0_55, %c0_56] : memref<16x1xf32, #tpu.memory_space<vmem>>, vector<8x1xf32>
    %102 = vector.broadcast %101 : vector<8x1xf32> to vector<8x16xf32>
    %103 = arith.addf %100, %102 : vector<8x16xf32>
    %c0_57 = arith.constant 0 : index
    %c0_58 = arith.constant 0 : index
    %c0_59 = arith.constant 0 : index
    %104 = vector.load %arg15[%c0_57, %c0_58, %c0_59] : memref<1x16x16xf32, #tpu.memory_space<vmem>>, vector<1x8x16xf32>
    %105 = vector.shape_cast %104 : vector<1x8x16xf32> to vector<8x16xf32>
    %106 = vector.shape_cast %103 : vector<8x16xf32> to vector<1x8x16xf32>
    tpu.vector_store %arg15[%c0_57, %c0_58, %c0_59], %106 {strides = array<i32>} : memref<1x16x16xf32, #tpu.memory_space<vmem>>, vector<1x8x16xf32>,
    %107 = vector.extract_strided_slice %11 {offsets = [0, 8], sizes = [16, 4], strides = [1, 1]} : vector<16x16xf32> to vector<16x4xf32>
    %108 = vector.extract_strided_slice %11 {offsets = [0, 12], sizes = [16, 4], strides = [1, 1]} : vector<16x16xf32> to vector<16x4xf32>
    %109 = vector.extract_strided_slice %19 {offsets = [0, 8], sizes = [16, 8], strides = [1, 1]} : vector<16x16xf32> to vector<16x8xf32>
    %c1_60 = arith.constant 1 : index
    %c0_61 = arith.constant 0 : index
    %110 = memref.load %arg12[%c1_60, %c0_61] : memref<2x3xf32, #tpu.memory_space<smem>>
    %c1_62 = arith.constant 1 : index
    %c1_63 = arith.constant 1 : index
    %111 = memref.load %arg12[%c1_62, %c1_63] : memref<2x3xf32, #tpu.memory_space<smem>>
    %c1_64 = arith.constant 1 : index
    %c2_65 = arith.constant 2 : index
    %112 = memref.load %arg12[%c1_64, %c2_65] : memref<2x3xf32, #tpu.memory_space<smem>>
    %113 = vector.broadcast %110 : f32 to vector<16x4xf32>
    %114 = arith.mulf %107, %113 : vector<16x4xf32>
    %115 = vector.broadcast %111 : f32 to vector<16x4xf32>
    %116 = arith.mulf %108, %115 : vector<16x4xf32>
    %117 = vector.broadcast %112 : f32 to vector<16x4xf32>
    %118 = arith.mulf %107, %117 : vector<16x4xf32>
    %cst_66 = arith.constant dense<0.000000e+00> : vector<16x16xf32>
    %119 = tpu.matmul %118, %108, %cst_66 {dimension_numbers = #tpu.dot_dimension_numbers<[1], [1], [0], [0], [0, 0, 1, 0], [], []>} : vector<16x4xf32>, vector<16x4xf32>, vector<16x16xf32> -> vector<16x16xf32>
    %120 = vector.extract_strided_slice %114 {offsets = [0, 0], sizes = [16, 1], strides = [1, 1]} : vector<16x4xf32> to vector<16x1xf32>
    %c0_67 = arith.constant 0 : index
    %c0_68 = arith.constant 0 : index
    %c0_69 = arith.constant 0 : index
    %121 = vector.load %arg9[%c0_67, %c0_68, %c0_69] : memref<4x16x16xf32, #tpu.memory_space<vmem>>, vector<1x16x16xf32>
    %122 = vector.shape_cast %121 : vector<1x16x16xf32> to vector<16x16xf32>
    %123 = vector.broadcast %120 : vector<16x1xf32> to vector<16x16xf32>
    %124 = arith.mulf %123, %122 : vector<16x16xf32>
    %125 = arith.addf %119, %124 : vector<16x16xf32>
    %126 = vector.extract_strided_slice %116 {offsets = [0, 0], sizes = [16, 1], strides = [1, 1]} : vector<16x4xf32> to vector<16x1xf32>
    %c0_70 = arith.constant 0 : index
    %c0_71 = arith.constant 0 : index
    %c0_72 = arith.constant 0 : index
    %127 = vector.load %arg10[%c0_70, %c0_71, %c0_72] : memref<4x16x16xf32, #tpu.memory_space<vmem>>, vector<1x16x16xf32>
    %128 = vector.shape_cast %127 : vector<1x16x16xf32> to vector<16x16xf32>
    %129 = vector.broadcast %126 : vector<16x1xf32> to vector<16x16xf32>
    %130 = arith.mulf %129, %128 : vector<16x16xf32>
    %131 = arith.addf %125, %130 : vector<16x16xf32>
    %132 = vector.extract_strided_slice %114 {offsets = [0, 1], sizes = [16, 1], strides = [1, 1]} : vector<16x4xf32> to vector<16x1xf32>
    %c1_73 = arith.constant 1 : index
    %c0_74 = arith.constant 0 : index
    %c0_75 = arith.constant 0 : index
    %133 = vector.load %arg9[%c1_73, %c0_74, %c0_75] : memref<4x16x16xf32, #tpu.memory_space<vmem>>, vector<1x16x16xf32>
    %134 = vector.shape_cast %133 : vector<1x16x16xf32> to vector<16x16xf32>
    %135 = vector.broadcast %132 : vector<16x1xf32> to vector<16x16xf32>
    %136 = arith.mulf %135, %134 : vector<16x16xf32>
    %137 = arith.addf %131, %136 : vector<16x16xf32>
    %138 = vector.extract_strided_slice %116 {offsets = [0, 1], sizes = [16, 1], strides = [1, 1]} : vector<16x4xf32> to vector<16x1xf32>
    %c1_76 = arith.constant 1 : index
    %c0_77 = arith.constant 0 : index
    %c0_78 = arith.constant 0 : index
    %139 = vector.load %arg10[%c1_76, %c0_77, %c0_78] : memref<4x16x16xf32, #tpu.memory_space<vmem>>, vector<1x16x16xf32>
    %140 = vector.shape_cast %139 : vector<1x16x16xf32> to vector<16x16xf32>
    %141 = vector.broadcast %138 : vector<16x1xf32> to vector<16x16xf32>
    %142 = arith.mulf %141, %140 : vector<16x16xf32>
    %143 = arith.addf %137, %142 : vector<16x16xf32>
    %144 = vector.extract_strided_slice %114 {offsets = [0, 2], sizes = [16, 1], strides = [1, 1]} : vector<16x4xf32> to vector<16x1xf32>
    %c2_79 = arith.constant 2 : index
    %c0_80 = arith.constant 0 : index
    %c0_81 = arith.constant 0 : index
    %145 = vector.load %arg9[%c2_79, %c0_80, %c0_81] : memref<4x16x16xf32, #tpu.memory_space<vmem>>, vector<1x16x16xf32>
    %146 = vector.shape_cast %145 : vector<1x16x16xf32> to vector<16x16xf32>
    %147 = vector.broadcast %144 : vector<16x1xf32> to vector<16x16xf32>
    %148 = arith.mulf %147, %146 : vector<16x16xf32>
    %149 = arith.addf %143, %148 : vector<16x16xf32>
    %150 = vector.extract_strided_slice %116 {offsets = [0, 2], sizes = [16, 1], strides = [1, 1]} : vector<16x4xf32> to vector<16x1xf32>
    %c2_82 = arith.constant 2 : index
    %c0_83 = arith.constant 0 : index
    %c0_84 = arith.constant 0 : index
    %151 = vector.load %arg10[%c2_82, %c0_83, %c0_84] : memref<4x16x16xf32, #tpu.memory_space<vmem>>, vector<1x16x16xf32>
    %152 = vector.shape_cast %151 : vector<1x16x16xf32> to vector<16x16xf32>
    %153 = vector.broadcast %150 : vector<16x1xf32> to vector<16x16xf32>
    %154 = arith.mulf %153, %152 : vector<16x16xf32>
    %155 = arith.addf %149, %154 : vector<16x16xf32>
    %156 = vector.extract_strided_slice %114 {offsets = [0, 3], sizes = [16, 1], strides = [1, 1]} : vector<16x4xf32> to vector<16x1xf32>
    %c3_85 = arith.constant 3 : index
    %c0_86 = arith.constant 0 : index
    %c0_87 = arith.constant 0 : index
    %157 = vector.load %arg9[%c3_85, %c0_86, %c0_87] : memref<4x16x16xf32, #tpu.memory_space<vmem>>, vector<1x16x16xf32>
    %158 = vector.shape_cast %157 : vector<1x16x16xf32> to vector<16x16xf32>
    %159 = vector.broadcast %156 : vector<16x1xf32> to vector<16x16xf32>
    %160 = arith.mulf %159, %158 : vector<16x16xf32>
    %161 = arith.addf %155, %160 : vector<16x16xf32>
    %162 = vector.extract_strided_slice %116 {offsets = [0, 3], sizes = [16, 1], strides = [1, 1]} : vector<16x4xf32> to vector<16x1xf32>
    %c3_88 = arith.constant 3 : index
    %c0_89 = arith.constant 0 : index
    %c0_90 = arith.constant 0 : index
    %163 = vector.load %arg10[%c3_88, %c0_89, %c0_90] : memref<4x16x16xf32, #tpu.memory_space<vmem>>, vector<1x16x16xf32>
    %164 = vector.shape_cast %163 : vector<1x16x16xf32> to vector<16x16xf32>
    %165 = vector.broadcast %162 : vector<16x1xf32> to vector<16x16xf32>
    %166 = arith.mulf %165, %164 : vector<16x16xf32>
    %167 = arith.addf %161, %166 : vector<16x16xf32>
    %cst_91 = arith.constant dense<0xFF800000> : vector<16xf32>
    %168 = vector.multi_reduction <maximumf>, %167, %cst_91 [1] : vector<16x16xf32> to vector<16xf32>
    %169 = vector.shape_cast %168 : vector<16xf32> to vector<16x1xf32>
    %170 = vector.broadcast %169 : vector<16x1xf32> to vector<16x16xf32>
    %171 = arith.subf %167, %170 : vector<16x16xf32>
    %172 = math.exp %171 : vector<16x16xf32>
    %cst_92 = arith.constant dense<0.000000e+00> : vector<16xf32>
    %173 = vector.multi_reduction <add>, %172, %cst_92 [1] : vector<16x16xf32> to vector<16xf32>
    %174 = vector.shape_cast %173 : vector<16xf32> to vector<16x1xf32>
    %175 = tpu.reciprocal %174 {approx = true} : vector<16x1xf32> -> vector<16x1xf32>
    %176 = vector.broadcast %175 : vector<16x1xf32> to vector<16x16xf32>
    %177 = arith.mulf %172, %176 : vector<16x16xf32>
    %cst_93 = arith.constant dense<0.000000e+00> : vector<8x16xf32>
    %178 = tpu.matmul %109, %177, %cst_93 {dimension_numbers = #tpu.dot_dimension_numbers<[0], [1], [1], [0], [0, 1, 1, 0], [], []>} : vector<16x8xf32>, vector<16x16xf32>, vector<8x16xf32> -> vector<8x16xf32>
    %179 = vector.shape_cast %177 : vector<16x16xf32> to vector<1x16x16xf32>
    %c0_94 = arith.constant 0 : index
    %c0_95 = arith.constant 0 : index
    %c0_96 = arith.constant 0 : index
    %180 = vector.load %arg11[%c0_94, %c0_95, %c0_96] : memref<8x16x16xf32, #tpu.memory_space<vmem>>, vector<8x16x16xf32>
    %181 = vector.broadcast %179 : vector<1x16x16xf32> to vector<8x16x16xf32>
    %182 = arith.mulf %181, %180 : vector<8x16x16xf32>
    %cst_97 = arith.constant dense<0.000000e+00> : vector<8x16xf32>
    %183 = vector.multi_reduction <add>, %182, %cst_97 [2] : vector<8x16x16xf32> to vector<8x16xf32>
    %c8 = arith.constant 8 : index
    %c0_98 = arith.constant 0 : index
    %184 = vector.load %arg13[%c8, %c0_98] : memref<16x1xf32, #tpu.memory_space<vmem>>, vector<8x1xf32>
    %185 = vector.broadcast %184 : vector<8x1xf32> to vector<8x16xf32>
    %186 = arith.mulf %183, %185 : vector<8x16xf32>
    %187 = arith.addf %186, %178 : vector<8x16xf32>
    %c8_99 = arith.constant 8 : index
    %c0_100 = arith.constant 0 : index
    %188 = vector.load %arg14[%c8_99, %c0_100] : memref<16x1xf32, #tpu.memory_space<vmem>>, vector<8x1xf32>
    %189 = vector.broadcast %188 : vector<8x1xf32> to vector<8x16xf32>
    %190 = arith.addf %187, %189 : vector<8x16xf32>
    %c0_101 = arith.constant 0 : index
    %c8_102 = arith.constant 8 : index
    %c0_103 = arith.constant 0 : index
    %191 = vector.load %arg15[%c0_101, %c8_102, %c0_103] : memref<1x16x16xf32, #tpu.memory_space<vmem>>, vector<1x8x16xf32>
    %192 = vector.shape_cast %191 : vector<1x8x16xf32> to vector<8x16xf32>
    %193 = vector.shape_cast %190 : vector<8x16xf32> to vector<1x8x16xf32>
    tpu.vector_store %arg15[%c0_101, %c8_102, %c0_103], %193 {strides = array<i32>} : memref<1x16x16xf32, #tpu.memory_space<vmem>>, vector<1x8x16xf32>,
    return
  }
  func.func @transform_0(%arg0: i32) -> (i32, i32, i32) {
    %c0_i32 = arith.constant 0 : i32
    %c0_i32_0 = arith.constant 0 : i32
    %c0_i32_1 = arith.constant 0 : i32
    return %arg0, %c0_i32, %c0_i32_0 : i32, i32, i32
  }
  func.func @transform_1(%arg0: i32) -> (i32, i32, i32) {
    %c0_i32 = arith.constant 0 : i32
    %c0_i32_0 = arith.constant 0 : i32
    %c0_i32_1 = arith.constant 0 : i32
    return %arg0, %c0_i32, %c0_i32_0 : i32, i32, i32
  }
  func.func @transform_2(%arg0: i32) -> (i32, i32) {
    %c0_i32 = arith.constant 0 : i32
    %c0_i32_0 = arith.constant 0 : i32
    %c0_i32_1 = arith.constant 0 : i32
    return %c0_i32, %c0_i32_0 : i32, i32
  }
  func.func @transform_3(%arg0: i32) -> (i32, i32) {
    %c0_i32 = arith.constant 0 : i32
    %c0_i32_0 = arith.constant 0 : i32
    %c0_i32_1 = arith.constant 0 : i32
    return %c0_i32, %c0_i32_0 : i32, i32
  }
  func.func @transform_4(%arg0: i32) -> (i32, i32) {
    %c0_i32 = arith.constant 0 : i32
    %c0_i32_0 = arith.constant 0 : i32
    %c0_i32_1 = arith.constant 0 : i32
    return %c0_i32, %c0_i32_0 : i32, i32
  }
  func.func @transform_5(%arg0: i32) -> (i32, i32) {
    %c0_i32 = arith.constant 0 : i32
    %c0_i32_0 = arith.constant 0 : i32
    %c0_i32_1 = arith.constant 0 : i32
    return %c0_i32, %c0_i32_0 : i32, i32
  }
  func.func @transform_6(%arg0: i32) -> (i32, i32) {
    %c0_i32 = arith.constant 0 : i32
    %c0_i32_0 = arith.constant 0 : i32
    %c0_i32_1 = arith.constant 0 : i32
    return %c0_i32, %c0_i32_0 : i32, i32
  }
  func.func @transform_7(%arg0: i32) -> (i32, i32) {
    %c0_i32 = arith.constant 0 : i32
    %c0_i32_0 = arith.constant 0 : i32
    %c0_i32_1 = arith.constant 0 : i32
    return %c0_i32, %c0_i32_0 : i32, i32
  }
  func.func @transform_8(%arg0: i32) -> (i32, i32, i32) {
    %c0_i32 = arith.constant 0 : i32
    %c0_i32_0 = arith.constant 0 : i32
    %c0_i32_1 = arith.constant 0 : i32
    %c0_i32_2 = arith.constant 0 : i32
    return %c0_i32, %c0_i32_0, %c0_i32_1 : i32, i32, i32
  }
  func.func @transform_9(%arg0: i32) -> (i32, i32, i32) {
    %c0_i32 = arith.constant 0 : i32
    %c0_i32_0 = arith.constant 0 : i32
    %c0_i32_1 = arith.constant 0 : i32
    %c0_i32_2 = arith.constant 0 : i32
    return %c0_i32, %c0_i32_0, %c0_i32_1 : i32, i32, i32
  }
  func.func @transform_10(%arg0: i32) -> (i32, i32, i32) {
    %c0_i32 = arith.constant 0 : i32
    %c0_i32_0 = arith.constant 0 : i32
    %c0_i32_1 = arith.constant 0 : i32
    %c0_i32_2 = arith.constant 0 : i32
    return %c0_i32, %c0_i32_0, %c0_i32_1 : i32, i32, i32
  }
  func.func @transform_11(%arg0: i32) -> (i32, i32) {
    %c0_i32 = arith.constant 0 : i32
    %c0_i32_0 = arith.constant 0 : i32
    %c0_i32_1 = arith.constant 0 : i32
    return %c0_i32, %c0_i32_0 : i32, i32
  }
  func.func @transform_12(%arg0: i32) -> (i32, i32) {
    %c0_i32 = arith.constant 0 : i32
    %c0_i32_0 = arith.constant 0 : i32
    %c0_i32_1 = arith.constant 0 : i32
    return %c0_i32, %c0_i32_0 : i32, i32
  }
  func.func @transform_13(%arg0: i32) -> (i32, i32) {
    %c0_i32 = arith.constant 0 : i32
    %c0_i32_0 = arith.constant 0 : i32
    %c0_i32_1 = arith.constant 0 : i32
    return %c0_i32, %c0_i32_0 : i32, i32
  }
  func.func @transform_14(%arg0: i32) -> (i32, i32, i32) {
    %c0_i32 = arith.constant 0 : i32
    %c0_i32_0 = arith.constant 0 : i32
    %c0_i32_1 = arith.constant 0 : i32
    return %arg0, %c0_i32, %c0_i32_0 : i32, i32, i32
  }
}

</mosaic_0001>

<llo_original>
// kernel: tpu_custom_call.1
$region0: #{tpu_custom_call.1}
  #allocation0 [shape = 'u32[]', space=smem, size = 0x4, offset = 0x4, fixed_abs, tag = 'smem constant byte address 0x4 - core index']
  #allocation1 [shape = 'u32[144,128]{1,0:T(1,128)}', space=vmem, size = 0x12000, scoped, tag = 'internal scratch']
  %s0 = inlined_call_operand.hbm [shape: f32[2,16,16], index: 0, kind: input, shape index: {}]
  %s1 = inlined_call_operand.hbm [shape: f32[2,16,16], index: 1, kind: input, shape index: {}]
  %s2 = inlined_call_operand.hbm [shape: f32[16,16], index: 2, kind: input, shape index: {}]
  %s3 = inlined_call_operand.hbm [shape: f32[1,16], index: 3, kind: input, shape index: {}]
  %s4 = inlined_call_operand.hbm [shape: f32[1,16], index: 4, kind: input, shape index: {}]
  %s5 = inlined_call_operand.hbm [shape: f32[16,16], index: 5, kind: input, shape index: {}]
  %s6 = inlined_call_operand.hbm [shape: f32[1,16], index: 6, kind: input, shape index: {}]
  %s7 = inlined_call_operand.hbm [shape: f32[1,16], index: 7, kind: input, shape index: {}]
  %s8 = inlined_call_operand.vmem [shape: f32[4,16,16], index: 8, kind: input, shape index: {}]
  %s9 = inlined_call_operand.hbm [shape: f32[4,16,16], index: 9, kind: input, shape index: {}]
  %s10 = inlined_call_operand.hbm [shape: f32[8,16,16], index: 10, kind: input, shape index: {}]
  %s11 = inlined_call_operand.vmem [shape: f32[2,3], index: 11, kind: input, shape index: {}]
  %s12 = inlined_call_operand.vmem [shape: f32[16,1], index: 12, kind: input, shape index: {}]
  %s13 = inlined_call_operand.vmem [shape: f32[16,1], index: 13, kind: input, shape index: {}]
  %s14 = inlined_call_operand.hbm [shape: f32[2,16,16], index: 14, kind: output, shape index: {}]
  %s15 = sld [smem:[#allocation0]]
  $region133: #{tpu_custom_call.1} parent=0
    _
  %s17 = ssub.s32 1, %s15
  %s18 = scalar_select 0, %s17, %s15
  $region1: #{tpu_custom_call.1} parent=0
    #allocation2 [shape = 'u8[16384]{0}', space=vmem, size = 0x4000, scoped, tag = 'input window, operand 0']
    #allocation3 [shape = 's32[2]{0}', space=sflag, size = 0x8, scoped, tag = 'scoped memory for tpu_custom_call.1']
    #allocation4 [shape = 's32[2]{0}', space=sflag, size = 0x8, scoped, tag = 'scoped memory for tpu_custom_call.1']
    #allocation5 [shape = 's32[2]{0}', space=sflag, size = 0x8, scoped, tag = 'scoped memory for tpu_custom_call.1']
    #allocation6 [shape = 'u8[16384]{0}', space=vmem, size = 0x4000, scoped, tag = 'input window, operand 1']
    #allocation7 [shape = 's32[2]{0}', space=sflag, size = 0x8, scoped, tag = 'scoped memory for tpu_custom_call.1']
    #allocation8 [shape = 'u8[8192]{0}', space=vmem, size = 0x2000, scoped, tag = 'input window, operand 2, single buffered']
    #allocation9 [shape = 'u8[512]{0}', space=vmem, size = 0x400, scoped, tag = 'input window, operand 3, single buffered']
    #allocation10 [shape = 's32[1]{0}', space=sflag, size = 0x4, scoped, tag = 'scoped memory for tpu_custom_call.1']
    #allocation11 [shape = 'u8[512]{0}', space=vmem, size = 0x400, scoped, tag = 'input window, operand 4, single buffered']
    #allocation12 [shape = 'u8[8192]{0}', space=vmem, size = 0x2000, scoped, tag = 'input window, operand 5, single buffered']
    #allocation13 [shape = 's32[1]{0}', space=sflag, size = 0x4, scoped, tag = 'scoped memory for tpu_custom_call.1']
    #allocation14 [shape = 'u8[512]{0}', space=vmem, size = 0x400, scoped, tag = 'input window, operand 6, single buffered']
    #allocation15 [shape = 'u8[512]{0}', space=vmem, size = 0x400, scoped, tag = 'input window, operand 7, single buffered']
    #allocation16 [shape = 's32[1]{0}', space=sflag, size = 0x4, scoped, tag = 'scoped memory for tpu_custom_call.1']
    #allocation17 [shape = 'u8[32768]{0}', space=vmem, size = 0x8000, scoped, tag = 'input window, operand 9, single buffered']
    #allocation18 [shape = 'u8[65536]{0}', space=vmem, size = 0x10000, scoped, tag = 'input window, operand 10, single buffered']
    #allocation19 [shape = 's32[1]{0}', space=sflag, size = 0x4, scoped, tag = 'scoped memory for tpu_custom_call.1']
    #allocation20 [shape = 'u8[1024]{0}', space=smem, size = 0x400, scoped, tag = 'input window, operand 11, single buffered']
    #allocation21 [shape = 'u8[16384]{0}', space=vmem, size = 0x4000, scoped, tag = 'output window, operand 0']
    %19 = vsyncpa [#allocation3], 0
    %s20 = scalar_lea.sflag [#allocation3], 1
    %21 = vsyncpa %s20, 0
    %22 = vsyncpa [#allocation7], 0
    %s23 = scalar_lea.sflag [#allocation7], 1
    %24 = vsyncpa %s23, 0
    %25 = vsyncpa [#allocation10], 0
    %26 = vsyncpa [#allocation13], 0
    %27 = vsyncpa [#allocation16], 0
    %28 = vsyncpa [#allocation19], 0
    %29 = vsyncpa [#allocation5], 0
    %30 = vsyncpa [#allocation4], 0
    %s31 = scalar_lea.sflag [#allocation4], 1
    %32 = vsyncpa %s31, 0
    loop: start=0, step=1, limit=4
    $region2: #{tpu_custom_call.1} parent=1 // loop_pre_header
      _
    $region3: #{tpu_custom_call.1} parent=1 // loop_header
      %s34 = sphi 0, %s38
      %p35 = scmp.ge.s32.totalorder %s34, 4
      %s44 = sphi 0, %s46
      %s47 = sphi 0, %s44
      %s48 = sphi 0, %s47
      %s64 = sphi 0, %s48
      %s70 = sphi 0, %s72
      %s73 = sphi 0, %s70
      %s74 = sphi 0, %s73
      %s90 = sphi 0, %s74
      %s94 = sphi 0, %s94
      %s96 = sphi 0, %s94
      %s97 = sphi 0, %s96
      %s111 = sphi 0, %s97
      %s115 = sphi 0, %s115
      %s117 = sphi 0, %s115
      %s118 = sphi 0, %s117
      %s132 = sphi 0, %s118
      %s136 = sphi 0, %s136
      %s138 = sphi 0, %s136
      %s139 = sphi 0, %s138
      %s153 = sphi 0, %s139
      %s157 = sphi 0, %s157
      %s159 = sphi 0, %s157
      %s160 = sphi 0, %s159
      %s174 = sphi 0, %s160
      %s178 = sphi 0, %s178
      %s180 = sphi 0, %s178
      %s181 = sphi 0, %s180
      %s195 = sphi 0, %s181
      %s199 = sphi 0, %s199
      %s201 = sphi 0, %s199
      %s202 = sphi 0, %s201
      %s216 = sphi 0, %s202
      %s220 = sphi 0, %s220
      %s222 = sphi 0, %s220
      %s223 = sphi 0, %s222
      %s237 = sphi 0, %s223
      %s241 = sphi 0, %s241
      %s243 = sphi 0, %s241
      %s244 = sphi 0, %s243
      %s258 = sphi 0, %s244
      %s262 = sphi 0, %s262
      %s264 = sphi 0, %s262
      %s265 = sphi 0, %s264
      %s279 = sphi 0, %s265
      %s283 = sphi 0, %s283
      %s285 = sphi 0, %s283
      %s286 = sphi 0, %s285
      %s300 = sphi 0, %s286
      %s304 = sphi 0, %s304
      %s306 = sphi 0, %s304
      %s307 = sphi 0, %s306
      %s321 = sphi 0, %s307
      %s325 = sphi 0, %s325
      %s327 = sphi 0, %s325
      %s328 = sphi 0, %s327
      %s342 = sphi 0, %s328
      %s348 = sphi 0, %s350
      %s351 = sphi 0, %s348
      %s352 = sphi 0, %s351
      %s368 = sphi 0, %s352
    $region4: #{tpu_custom_call.1} parent=1 // loop_header_branch
      %37 = sbr.rel (%p35) target = $region8
    $region5: #{tpu_custom_call.1} parent=1 // loop_body
      %s39 = ssub.s32 %s34, 1
      %s40 = ssub.s32 %s34, 2
      %s41 = sadd.s32 %s34, 1
      %s42 = ssub.s32 %s34, %s41
      %p43 = scmp.eq.s32.totalorder %s42, 0
      %s45 = sadd.s32 %s44, 1
      %s46 = scalar_select %p43, %s44, %s45
      %p49 = pneg %p43
      %p50 = scmp.eq.s32.totalorder %s34, 1
      %p51 = por %p49, %p50
      %p52 = scmp.ne.s32.totalorder %s44, %s47
      %p53 = scmp.eq.s32.totalorder %s34, 0
      %p54 = por %p52, %p53
      %p55 = scmp.ne.s32.totalorder %s44, %s47
      %p56 = scmp.eq.s32.totalorder %s39, 1
      %p57 = por %p55, %p56
      %p58 = scmp.ne.s32.totalorder %s47, %s48
      %p59 = scmp.eq.s32.totalorder %s39, 0
      %p60 = por %p58, %p59
      %p61 = scmp.ne.s32.totalorder %s47, %s48
      %p62 = scmp.eq.s32.totalorder %s40, 1
      %p63 = por %p61, %p62
      %p65 = scmp.ne.s32.totalorder %s48, %s64
      %p66 = scmp.eq.s32.totalorder %s40, 0
      %p67 = por %p65, %p66
      %s68 = ssub.s32 %s34, %s41
      %p69 = scmp.eq.s32.totalorder %s68, 0
      %s71 = sadd.s32 %s70, 1
      %s72 = scalar_select %p69, %s70, %s71
      %p75 = pneg %p69
      %p76 = scmp.eq.s32.totalorder %s34, 1
      %p77 = por %p75, %p76
      %p78 = scmp.ne.s32.totalorder %s70, %s73
      %p79 = scmp.eq.s32.totalorder %s34, 0
      %p80 = por %p78, %p79
      %p81 = scmp.ne.s32.totalorder %s70, %s73
      %p82 = scmp.eq.s32.totalorder %s39, 1
      %p83 = por %p81, %p82
      %p84 = scmp.ne.s32.totalorder %s73, %s74
      %p85 = scmp.eq.s32.totalorder %s39, 0
      %p86 = por %p84, %p85
      %p87 = scmp.ne.s32.totalorder %s73, %s74
      %p88 = scmp.eq.s32.totalorder %s40, 1
      %p89 = por %p87, %p88
      %p91 = scmp.ne.s32.totalorder %s74, %s90
      %p92 = scmp.eq.s32.totalorder %s40, 0
      %p93 = por %p91, %p92
      %s95 = sadd.s32 %s94, 1
      %p98 = scmp.eq.s32.totalorder %s34, 1
      %p99 = scmp.ne.s32.totalorder %s94, %s96
      %p100 = scmp.eq.s32.totalorder %s34, 0
      %p101 = por %p99, %p100
      %p102 = scmp.ne.s32.totalorder %s94, %s96
      %p103 = scmp.eq.s32.totalorder %s39, 1
      %p104 = por %p102, %p103
      %p105 = scmp.ne.s32.totalorder %s96, %s97
      %p106 = scmp.eq.s32.totalorder %s39, 0
      %p107 = por %p105, %p106
      %p108 = scmp.ne.s32.totalorder %s96, %s97
      %p109 = scmp.eq.s32.totalorder %s40, 1
      %p110 = por %p108, %p109
      %p112 = scmp.ne.s32.totalorder %s97, %s111
      %p113 = scmp.eq.s32.totalorder %s40, 0
      %p114 = por %p112, %p113
      %s116 = sadd.s32 %s115, 1
      %p119 = scmp.eq.s32.totalorder %s34, 1
      %p120 = scmp.ne.s32.totalorder %s115, %s117
      %p121 = scmp.eq.s32.totalorder %s34, 0
      %p122 = por %p120, %p121
      %p123 = scmp.ne.s32.totalorder %s115, %s117
      %p124 = scmp.eq.s32.totalorder %s39, 1
      %p125 = por %p123, %p124
      %p126 = scmp.ne.s32.totalorder %s117, %s118
      %p127 = scmp.eq.s32.totalorder %s39, 0
      %p128 = por %p126, %p127
      %p129 = scmp.ne.s32.totalorder %s117, %s118
      %p130 = scmp.eq.s32.totalorder %s40, 1
      %p131 = por %p129, %p130
      %p133 = scmp.ne.s32.totalorder %s118, %s132
      %p134 = scmp.eq.s32.totalorder %s40, 0
      %p135 = por %p133, %p134
      %s137 = sadd.s32 %s136, 1
      %p140 = scmp.eq.s32.totalorder %s34, 1
      %p141 = scmp.ne.s32.totalorder %s136, %s138
      %p142 = scmp.eq.s32.totalorder %s34, 0
      %p143 = por %p141, %p142
      %p144 = scmp.ne.s32.totalorder %s136, %s138
      %p145 = scmp.eq.s32.totalorder %s39, 1
      %p146 = por %p144, %p145
      %p147 = scmp.ne.s32.totalorder %s138, %s139
      %p148 = scmp.eq.s32.totalorder %s39, 0
      %p149 = por %p147, %p148
      %p150 = scmp.ne.s32.totalorder %s138, %s139
      %p151 = scmp.eq.s32.totalorder %s40, 1
      %p152 = por %p150, %p151
      %p154 = scmp.ne.s32.totalorder %s139, %s153
      %p155 = scmp.eq.s32.totalorder %s40, 0
      %p156 = por %p154, %p155
      %s158 = sadd.s32 %s157, 1
      %p161 = scmp.eq.s32.totalorder %s34, 1
      %p162 = scmp.ne.s32.totalorder %s157, %s159
      %p163 = scmp.eq.s32.totalorder %s34, 0
      %p164 = por %p162, %p163
      %p165 = scmp.ne.s32.totalorder %s157, %s159
      %p166 = scmp.eq.s32.totalorder %s39, 1
      %p167 = por %p165, %p166
      %p168 = scmp.ne.s32.totalorder %s159, %s160
      %p169 = scmp.eq.s32.totalorder %s39, 0
      %p170 = por %p168, %p169
      %p171 = scmp.ne.s32.totalorder %s159, %s160
      %p172 = scmp.eq.s32.totalorder %s40, 1
      %p173 = por %p171, %p172
      %p175 = scmp.ne.s32.totalorder %s160, %s174
      %p176 = scmp.eq.s32.totalorder %s40, 0
      %p177 = por %p175, %p176
      %s179 = sadd.s32 %s178, 1
      %p182 = scmp.eq.s32.totalorder %s34, 1
      %p183 = scmp.ne.s32.totalorder %s178, %s180
      %p184 = scmp.eq.s32.totalorder %s34, 0
      %p185 = por %p183, %p184
      %p186 = scmp.ne.s32.totalorder %s178, %s180
      %p187 = scmp.eq.s32.totalorder %s39, 1
      %p188 = por %p186, %p187
      %p189 = scmp.ne.s32.totalorder %s180, %s181
      %p190 = scmp.eq.s32.totalorder %s39, 0
      %p191 = por %p189, %p190
      %p192 = scmp.ne.s32.totalorder %s180, %s181
      %p193 = scmp.eq.s32.totalorder %s40, 1
      %p194 = por %p192, %p193
      %p196 = scmp.ne.s32.totalorder %s181, %s195
      %p197 = scmp.eq.s32.totalorder %s40, 0
      %p198 = por %p196, %p197
      %s200 = sadd.s32 %s199, 1
      %p203 = scmp.eq.s32.totalorder %s34, 1
      %p204 = scmp.ne.s32.totalorder %s199, %s201
      %p205 = scmp.eq.s32.totalorder %s34, 0
      %p206 = por %p204, %p205
      %p207 = scmp.ne.s32.totalorder %s199, %s201
      %p208 = scmp.eq.s32.totalorder %s39, 1
      %p209 = por %p207, %p208
      %p210 = scmp.ne.s32.totalorder %s201, %s202
      %p211 = scmp.eq.s32.totalorder %s39, 0
      %p212 = por %p210, %p211
      %p213 = scmp.ne.s32.totalorder %s201, %s202
      %p214 = scmp.eq.s32.totalorder %s40, 1
      %p215 = por %p213, %p214
      %p217 = scmp.ne.s32.totalorder %s202, %s216
      %p218 = scmp.eq.s32.totalorder %s40, 0
      %p219 = por %p217, %p218
      %s221 = sadd.s32 %s220, 1
      %p224 = scmp.eq.s32.totalorder %s34, 1
      %p225 = scmp.ne.s32.totalorder %s220, %s222
      %p226 = scmp.eq.s32.totalorder %s34, 0
      %p227 = por %p225, %p226
      %p228 = scmp.ne.s32.totalorder %s220, %s222
      %p229 = scmp.eq.s32.totalorder %s39, 1
      %p230 = por %p228, %p229
      %p231 = scmp.ne.s32.totalorder %s222, %s223
      %p232 = scmp.eq.s32.totalorder %s39, 0
      %p233 = por %p231, %p232
      %p234 = scmp.ne.s32.totalorder %s222, %s223
      %p235 = scmp.eq.s32.totalorder %s40, 1
      %p236 = por %p234, %p235
      %p238 = scmp.ne.s32.totalorder %s223, %s237
      %p239 = scmp.eq.s32.totalorder %s40, 0
      %p240 = por %p238, %p239
      %s242 = sadd.s32 %s241, 1
      %p245 = scmp.eq.s32.totalorder %s34, 1
      %p246 = scmp.ne.s32.totalorder %s241, %s243
      %p247 = scmp.eq.s32.totalorder %s34, 0
      %p248 = por %p246, %p247
      %p249 = scmp.ne.s32.totalorder %s241, %s243
      %p250 = scmp.eq.s32.totalorder %s39, 1
      %p251 = por %p249, %p250
      %p252 = scmp.ne.s32.totalorder %s243, %s244
      %p253 = scmp.eq.s32.totalorder %s39, 0
      %p254 = por %p252, %p253
      %p255 = scmp.ne.s32.totalorder %s243, %s244
      %p256 = scmp.eq.s32.totalorder %s40, 1
      %p257 = por %p255, %p256
      %p259 = scmp.ne.s32.totalorder %s244, %s258
      %p260 = scmp.eq.s32.totalorder %s40, 0
      %p261 = por %p259, %p260
      %s263 = sadd.s32 %s262, 1
      %p266 = scmp.eq.s32.totalorder %s34, 1
      %p267 = scmp.ne.s32.totalorder %s262, %s264
      %p268 = scmp.eq.s32.totalorder %s34, 0
      %p269 = por %p267, %p268
      %p270 = scmp.ne.s32.totalorder %s262, %s264
      %p271 = scmp.eq.s32.totalorder %s39, 1
      %p272 = por %p270, %p271
      %p273 = scmp.ne.s32.totalorder %s264, %s265
      %p274 = scmp.eq.s32.totalorder %s39, 0
      %p275 = por %p273, %p274
      %p276 = scmp.ne.s32.totalorder %s264, %s265
      %p277 = scmp.eq.s32.totalorder %s40, 1
      %p278 = por %p276, %p277
      %p280 = scmp.ne.s32.totalorder %s265, %s279
      %p281 = scmp.eq.s32.totalorder %s40, 0
      %p282 = por %p280, %p281
      %s284 = sadd.s32 %s283, 1
      %p287 = scmp.eq.s32.totalorder %s34, 1
      %p288 = scmp.ne.s32.totalorder %s283, %s285
      %p289 = scmp.eq.s32.totalorder %s34, 0
      %p290 = por %p288, %p289
      %p291 = scmp.ne.s32.totalorder %s283, %s285
      %p292 = scmp.eq.s32.totalorder %s39, 1
      %p293 = por %p291, %p292
      %p294 = scmp.ne.s32.totalorder %s285, %s286
      %p295 = scmp.eq.s32.totalorder %s39, 0
      %p296 = por %p294, %p295
      %p297 = scmp.ne.s32.totalorder %s285, %s286
      %p298 = scmp.eq.s32.totalorder %s40, 1
      %p299 = por %p297, %p298
      %p301 = scmp.ne.s32.totalorder %s286, %s300
      %p302 = scmp.eq.s32.totalorder %s40, 0
      %p303 = por %p301, %p302
      %s305 = sadd.s32 %s304, 1
      %p308 = scmp.eq.s32.totalorder %s34, 1
      %p309 = scmp.ne.s32.totalorder %s304, %s306
      %p310 = scmp.eq.s32.totalorder %s34, 0
      %p311 = por %p309, %p310
      %p312 = scmp.ne.s32.totalorder %s304, %s306
      %p313 = scmp.eq.s32.totalorder %s39, 1
      %p314 = por %p312, %p313
      %p315 = scmp.ne.s32.totalorder %s306, %s307
      %p316 = scmp.eq.s32.totalorder %s39, 0
      %p317 = por %p315, %p316
      %p318 = scmp.ne.s32.totalorder %s306, %s307
      %p319 = scmp.eq.s32.totalorder %s40, 1
      %p320 = por %p318, %p319
      %p322 = scmp.ne.s32.totalorder %s307, %s321
      %p323 = scmp.eq.s32.totalorder %s40, 0
      %p324 = por %p322, %p323
      %s326 = sadd.s32 %s325, 1
      %p329 = scmp.eq.s32.totalorder %s34, 1
      %p330 = scmp.ne.s32.totalorder %s325, %s327
      %p331 = scmp.eq.s32.totalorder %s34, 0
      %p332 = por %p330, %p331
      %p333 = scmp.ne.s32.totalorder %s325, %s327
      %p334 = scmp.eq.s32.totalorder %s39, 1
      %p335 = por %p333, %p334
      %p336 = scmp.ne.s32.totalorder %s327, %s328
      %p337 = scmp.eq.s32.totalorder %s39, 0
      %p338 = por %p336, %p337
      %p339 = scmp.ne.s32.totalorder %s327, %s328
      %p340 = scmp.eq.s32.totalorder %s40, 1
      %p341 = por %p339, %p340
      %p343 = scmp.ne.s32.totalorder %s328, %s342
      %p344 = scmp.eq.s32.totalorder %s40, 0
      %p345 = por %p343, %p344
      %s346 = ssub.s32 %s34, %s41
      %p347 = scmp.eq.s32.totalorder %s346, 0
      %s349 = sadd.s32 %s348, 1
      %s350 = scalar_select %p347, %s348, %s349
      %p353 = pneg %p347
      %p354 = scmp.eq.s32.totalorder %s34, 1
      %p355 = por %p353, %p354
      %p356 = scmp.ne.s32.totalorder %s348, %s351
      %p357 = scmp.eq.s32.totalorder %s34, 0
      %p358 = por %p356, %p357
      %p359 = scmp.ne.s32.totalorder %s348, %s351
      %p360 = scmp.eq.s32.totalorder %s39, 1
      %p361 = por %p359, %p360
      %p362 = scmp.ne.s32.totalorder %s351, %s352
      %p363 = scmp.eq.s32.totalorder %s39, 0
      %p364 = por %p362, %p363
      %p365 = scmp.ne.s32.totalorder %s351, %s352
      %p366 = scmp.eq.s32.totalorder %s40, 1
      %p367 = por %p365, %p366
      %p369 = scmp.ne.s32.totalorder %s352, %s368
      %p370 = scmp.eq.s32.totalorder %s40, 0
      %p371 = por %p369, %p370
      %p372 = scmp.le.s32.totalorder 1, %s34
      %p373 = scmp.lt.s32.totalorder %s34, 3
      %p374 = pnand %p372, %p373
      %p375 = pneg %p374
      // Predicated region
      $region9: #{tpu_custom_call.1} parent=5 // pred_check
        _
      $region10: #{tpu_custom_call.1} parent=5 // pred_check_branch
        %377 = sbr.rel (%p374) target = $region12
      $region11: #{tpu_custom_call.1} parent=5 // pred_region
        %s378 = ssub.s32 %s34, 1
        // Predicated region
        $region13: #{tpu_custom_call.1} parent=11 // pred_check
          %p379 = pneg %p107
        $region14: #{tpu_custom_call.1} parent=11 // pred_check_branch
          %381 = sbr.rel (%p379) target = $region16
        $region15: #{tpu_custom_call.1} parent=11 // pred_region
          %s383 = ssub.s32 256, 256
          %384 = vsyncadd [#allocation7], %s383
          %s385 = sshll.u32 [#allocation8], 4
          %s386 = int_to_ptr.vmem [resolvable:$true] %s385
          %391 = dma.hbm_to_vmem [thread:$0]  %s2, 256, %s386, [#allocation7], 128, 128, 8
        $region16: #{tpu_custom_call.1} parent=11 // pred_fallthru
          _
        // Predicated region
        $region17: #{tpu_custom_call.1} parent=11 // pred_check
          %p392 = pneg %p128
        $region18: #{tpu_custom_call.1} parent=11 // pred_check_branch
          %394 = sbr.rel (%p392) target = $region20
        $region19: #{tpu_custom_call.1} parent=11 // pred_region
          %s396 = ssub.s32 16, 16
          %397 = vsyncadd [#allocation10], %s396
          %s399 = sshll.u32 [#allocation9], 4
          %s400 = int_to_ptr.vmem [resolvable:$true] %s399
          %402 = dma.hbm_to_vmem [thread:$0]  %s3, 16, %s400, [#allocation10]
        $region20: #{tpu_custom_call.1} parent=11 // pred_fallthru
          _
        // Predicated region
        $region21: #{tpu_custom_call.1} parent=11 // pred_check
          %p403 = pneg %p149
        $region22: #{tpu_custom_call.1} parent=11 // pred_check_branch
          %405 = sbr.rel (%p403) target = $region24
        $region23: #{tpu_custom_call.1} parent=11 // pred_region
          %s407 = ssub.s32 16, 16
          %408 = vsyncadd [#allocation10], %s407
          %s410 = sshll.u32 [#allocation11], 4
          %s411 = int_to_ptr.vmem [resolvable:$true] %s410
          %413 = dma.hbm_to_vmem [thread:$0]  %s4, 16, %s411, [#allocation10]
        $region24: #{tpu_custom_call.1} parent=11 // pred_fallthru
          _
        // Predicated region
        $region25: #{tpu_custom_call.1} parent=11 // pred_check
          %p414 = pneg %p170
        $region26: #{tpu_custom_call.1} parent=11 // pred_check_branch
          %416 = sbr.rel (%p414) target = $region28
        $region27: #{tpu_custom_call.1} parent=11 // pred_region
          %s418 = ssub.s32 256, 256
          %419 = vsyncadd [#allocation13], %s418
          %s420 = sshll.u32 [#allocation12], 4
          %s421 = int_to_ptr.vmem [resolvable:$true] %s420
          %426 = dma.hbm_to_vmem [thread:$0]  %s5, 256, %s421, [#allocation13], 128, 128, 8
        $region28: #{tpu_custom_call.1} parent=11 // pred_fallthru
          _
        // Predicated region
        $region29: #{tpu_custom_call.1} parent=11 // pred_check
          %p427 = pneg %p191
        $region30: #{tpu_custom_call.1} parent=11 // pred_check_branch
          %429 = sbr.rel (%p427) target = $region32
        $region31: #{tpu_custom_call.1} parent=11 // pred_region
          %s431 = ssub.s32 16, 16
          %432 = vsyncadd [#allocation13], %s431
          %s434 = sshll.u32 [#allocation14], 4
          %s435 = int_to_ptr.vmem [resolvable:$true] %s434
          %437 = dma.hbm_to_vmem [thread:$0]  %s6, 16, %s435, [#allocation13]
        $region32: #{tpu_custom_call.1} parent=11 // pred_fallthru
          _
        // Predicated region
        $region33: #{tpu_custom_call.1} parent=11 // pred_check
          %p438 = pneg %p212
        $region34: #{tpu_custom_call.1} parent=11 // pred_check_branch
          %440 = sbr.rel (%p438) target = $region36
        $region35: #{tpu_custom_call.1} parent=11 // pred_region
          %s442 = ssub.s32 16, 16
          %443 = vsyncadd [#allocation16], %s442
          %s445 = sshll.u32 [#allocation15], 4
          %s446 = int_to_ptr.vmem [resolvable:$true] %s445
          %448 = dma.hbm_to_vmem [thread:$0]  %s7, 16, %s446, [#allocation16]
        $region36: #{tpu_custom_call.1} parent=11 // pred_fallthru
          _
        // Predicated region
        $region37: #{tpu_custom_call.1} parent=11 // pred_check
          %p449 = pneg %p233
        $region38: #{tpu_custom_call.1} parent=11 // pred_check_branch
          %451 = sbr.rel (%p449) target = $region40
        $region39: #{tpu_custom_call.1} parent=11 // pred_region
          _
        $region40: #{tpu_custom_call.1} parent=11 // pred_fallthru
          _
        // Predicated region
        $region41: #{tpu_custom_call.1} parent=11 // pred_check
          %p452 = pneg %p254
        $region42: #{tpu_custom_call.1} parent=11 // pred_check_branch
          %454 = sbr.rel (%p452) target = $region44
        $region43: #{tpu_custom_call.1} parent=11 // pred_region
          %s456 = ssub.s32 1024, 1024
          %457 = vsyncadd [#allocation16], %s456
          %s458 = sshll.u32 [#allocation17], 4
          %s459 = int_to_ptr.vmem [resolvable:$true] %s458
          %464 = dma.hbm_to_vmem [thread:$0]  %s9, 1024, %s459, [#allocation16], 128, 128, 8
        $region44: #{tpu_custom_call.1} parent=11 // pred_fallthru
          _
        // Predicated region
        $region45: #{tpu_custom_call.1} parent=11 // pred_check
          %p465 = pneg %p275
        $region46: #{tpu_custom_call.1} parent=11 // pred_check_branch
          %467 = sbr.rel (%p465) target = $region48
        $region47: #{tpu_custom_call.1} parent=11 // pred_region
          %s469 = ssub.s32 2048, 2048
          %470 = vsyncadd [#allocation19], %s469
          %s471 = sshll.u32 [#allocation18], 4
          %s472 = int_to_ptr.vmem [resolvable:$true] %s471
          %477 = dma.hbm_to_vmem [thread:$0]  %s10, 2048, %s472, [#allocation19], 128, 128, 8
        $region48: #{tpu_custom_call.1} parent=11 // pred_fallthru
          _
        // Predicated region
        $region49: #{tpu_custom_call.1} parent=11 // pred_check
          %p478 = pneg %p296
        $region50: #{tpu_custom_call.1} parent=11 // pred_check_branch
          %480 = sbr.rel (%p478) target = $region52
        $region51: #{tpu_custom_call.1} parent=11 // pred_region
          %s482 = ssub.s32 32, 32
          %483 = vsyncadd [#allocation5], %s482
          %s485 = sshll.u32 %s11, 4
          %s486 = int_to_ptr.vmem [resolvable:$true] %s485
          %488 = dma.vmem_to_smem %s486, 32, [#allocation20], [#allocation5]
        $region52: #{tpu_custom_call.1} parent=11 // pred_fallthru
          _
        // Predicated region
        $region53: #{tpu_custom_call.1} parent=11 // pred_check
          %p489 = pneg %p317
        $region54: #{tpu_custom_call.1} parent=11 // pred_check_branch
          %491 = sbr.rel (%p489) target = $region56
        $region55: #{tpu_custom_call.1} parent=11 // pred_region
          _
        $region56: #{tpu_custom_call.1} parent=11 // pred_fallthru
          _
        // Predicated region
        $region57: #{tpu_custom_call.1} parent=11 // pred_check
          %p492 = pneg %p338
        $region58: #{tpu_custom_call.1} parent=11 // pred_check_branch
          %494 = sbr.rel (%p492) target = $region60
        $region59: #{tpu_custom_call.1} parent=11 // pred_region
          _
        $region60: #{tpu_custom_call.1} parent=11 // pred_fallthru
          _
      $region12: #{tpu_custom_call.1} parent=5 // pred_fallthru
        _
      %p495 = scmp.lt.s32.totalorder %s34, 2
      // Predicated region
      $region61: #{tpu_custom_call.1} parent=5 // pred_check
        %p496 = pneg %p495
      $region62: #{tpu_custom_call.1} parent=5 // pred_check_branch
        %498 = sbr.rel (%p496) target = $region64
      $region63: #{tpu_custom_call.1} parent=5 // pred_region
        // Predicated region
        $region65: #{tpu_custom_call.1} parent=63 // pred_check
          %p499 = pneg %p54
        $region66: #{tpu_custom_call.1} parent=63 // pred_check_branch
          %501 = sbr.rel (%p499) target = $region68
        $region67: #{tpu_custom_call.1} parent=63 // pred_region
          %s502 = sand.u32 %s44, 1
          %s503 = scalar_lea.sflag [#allocation3], %s502
          %s504 = sand.u32 %s44, 1
          %s505 = smul.addr %s504, 16
          %s506 = scalar_lea.vmem [#allocation2], %s505
          %s508 = ssub.s32 256, 256
          %509 = vsyncadd %s503, %s508
          %s510 = smul.addr %s34, 2
          %s511 = smul.addr %s510, 128
          %s512 = scalar_lea.hbm %s0, %s511
          %s513 = sshll.u32 %s506, 4
          %s514 = int_to_ptr.vmem [resolvable:$true] %s513
          %519 = dma.hbm_to_vmem [thread:$0]  %s512, 256, %s514, %s503, 128, 128, 8
        $region68: #{tpu_custom_call.1} parent=63 // pred_fallthru
          _
        // Predicated region
        $region69: #{tpu_custom_call.1} parent=63 // pred_check
          %p520 = pneg %p80
        $region70: #{tpu_custom_call.1} parent=63 // pred_check_branch
          %522 = sbr.rel (%p520) target = $region72
        $region71: #{tpu_custom_call.1} parent=63 // pred_region
          %s523 = sand.u32 %s34, 1
          %s524 = scalar_lea.sflag [#allocation7], %s523
          %s525 = sand.u32 %s70, 1
          %s526 = smul.addr %s525, 16
          %s527 = scalar_lea.vmem [#allocation6], %s526
          %s529 = ssub.s32 256, 256
          %530 = vsyncadd %s524, %s529
          %s531 = smul.addr %s34, 2
          %s532 = smul.addr %s531, 128
          %s533 = scalar_lea.hbm %s1, %s532
          %s534 = sshll.u32 %s527, 4
          %s535 = int_to_ptr.vmem [resolvable:$true] %s534
          %540 = dma.hbm_to_vmem [thread:$0]  %s533, 256, %s535, %s524, 128, 128, 8
        $region72: #{tpu_custom_call.1} parent=63 // pred_fallthru
          _
      $region64: #{tpu_custom_call.1} parent=5 // pred_fallthru
        _
      %p541 = scmp.le.s32.totalorder 1, %s34
      %p542 = scmp.lt.s32.totalorder %s34, 3
      %p543 = pnand %p541, %p542
      %p544 = pneg %p543
      // Predicated region
      $region73: #{tpu_custom_call.1} parent=5 // pred_check
        _
      $region74: #{tpu_custom_call.1} parent=5 // pred_check_branch
        %546 = sbr.rel (%p543) target = $region76
      $region75: #{tpu_custom_call.1} parent=5 // pred_region
        %s547 = ssub.s32 %s34, 1
        %s548 = sand.u32 %s47, 1
        %s549 = scalar_lea.sflag [#allocation3], %s548
        %s550 = sand.u32 %s47, 1
        %s551 = smul.addr %s550, 16
        %s552 = scalar_lea.vmem [#allocation2], %s551
        // Predicated region
        $region77: #{tpu_custom_call.1} parent=75 // pred_check
          %p553 = pneg %p60
        $region78: #{tpu_custom_call.1} parent=75 // pred_check_branch
          %555 = sbr.rel (%p553) target = $region80
        $region79: #{tpu_custom_call.1} parent=75 // pred_region
          %556 = dma.done %s549, 256
        $region80: #{tpu_custom_call.1} parent=75 // pred_fallthru
          _
        %s557 = sand.u32 %s39, 1
        %s558 = scalar_lea.sflag [#allocation7], %s557
        %s559 = sand.u32 %s73, 1
        %s560 = smul.addr %s559, 16
        %s561 = scalar_lea.vmem [#allocation6], %s560
        // Predicated region
        $region81: #{tpu_custom_call.1} parent=75 // pred_check
          %p562 = pneg %p86
        $region82: #{tpu_custom_call.1} parent=75 // pred_check_branch
          %564 = sbr.rel (%p562) target = $region84
        $region83: #{tpu_custom_call.1} parent=75 // pred_region
          %565 = dma.done %s558, 256
        $region84: #{tpu_custom_call.1} parent=75 // pred_fallthru
          _
        // Predicated region
        $region85: #{tpu_custom_call.1} parent=75 // pred_check
          %p566 = pneg %p107
        $region86: #{tpu_custom_call.1} parent=75 // pred_check_branch
          %568 = sbr.rel (%p566) target = $region88
        $region87: #{tpu_custom_call.1} parent=75 // pred_region
          %569 = dma.done [#allocation7], 256
        $region88: #{tpu_custom_call.1} parent=75 // pred_fallthru
          _
        // Predicated region
        $region89: #{tpu_custom_call.1} parent=75 // pred_check
          %p570 = pneg %p128
        $region90: #{tpu_custom_call.1} parent=75 // pred_check_branch
          %572 = sbr.rel (%p570) target = $region92
        $region91: #{tpu_custom_call.1} parent=75 // pred_region
          %573 = dma.done [#allocation10], 16
        $region92: #{tpu_custom_call.1} parent=75 // pred_fallthru
          _
        // Predicated region
        $region93: #{tpu_custom_call.1} parent=75 // pred_check
          %p574 = pneg %p149
        $region94: #{tpu_custom_call.1} parent=75 // pred_check_branch
          %576 = sbr.rel (%p574) target = $region96
        $region95: #{tpu_custom_call.1} parent=75 // pred_region
          %577 = dma.done [#allocation10], 16
        $region96: #{tpu_custom_call.1} parent=75 // pred_fallthru
          _
        // Predicated region
        $region97: #{tpu_custom_call.1} parent=75 // pred_check
          %p578 = pneg %p170
        $region98: #{tpu_custom_call.1} parent=75 // pred_check_branch
          %580 = sbr.rel (%p578) target = $region100
        $region99: #{tpu_custom_call.1} parent=75 // pred_region
          %581 = dma.done [#allocation13], 256
        $region100: #{tpu_custom_call.1} parent=75 // pred_fallthru
          _
        // Predicated region
        $region101: #{tpu_custom_call.1} parent=75 // pred_check
          %p582 = pneg %p191
        $region102: #{tpu_custom_call.1} parent=75 // pred_check_branch
          %584 = sbr.rel (%p582) target = $region104
        $region103: #{tpu_custom_call.1} parent=75 // pred_region
          %585 = dma.done [#allocation13], 16
        $region104: #{tpu_custom_call.1} parent=75 // pred_fallthru
          _
        // Predicated region
        $region105: #{tpu_custom_call.1} parent=75 // pred_check
          %p586 = pneg %p212
        $region106: #{tpu_custom_call.1} parent=75 // pred_check_branch
          %588 = sbr.rel (%p586) target = $region108
        $region107: #{tpu_custom_call.1} parent=75 // pred_region
          %589 = dma.done [#allocation16], 16
        $region108: #{tpu_custom_call.1} parent=75 // pred_fallthru
          _
        // Predicated region
        $region109: #{tpu_custom_call.1} parent=75 // pred_check
          %p590 = pneg %p254
        $region110: #{tpu_custom_call.1} parent=75 // pred_check_branch
          %592 = sbr.rel (%p590) target = $region112
        $region111: #{tpu_custom_call.1} parent=75 // pred_region
          %593 = dma.done [#allocation16], 1024
        $region112: #{tpu_custom_call.1} parent=75 // pred_fallthru
          _
        // Predicated region
        $region113: #{tpu_custom_call.1} parent=75 // pred_check
          %p594 = pneg %p275
        $region114: #{tpu_custom_call.1} parent=75 // pred_check_branch
          %596 = sbr.rel (%p594) target = $region116
        $region115: #{tpu_custom_call.1} parent=75 // pred_region
          %597 = dma.done [#allocation19], 2048
        $region116: #{tpu_custom_call.1} parent=75 // pred_fallthru
          _
        // Predicated region
        $region117: #{tpu_custom_call.1} parent=75 // pred_check
          %p598 = pneg %p296
        $region118: #{tpu_custom_call.1} parent=75 // pred_check_branch
          %600 = sbr.rel (%p598) target = $region120
        $region119: #{tpu_custom_call.1} parent=75 // pred_region
          %601 = dma.done [#allocation5], 32
        $region120: #{tpu_custom_call.1} parent=75 // pred_fallthru
          _
        %602 = sfence
        %s603 = sand.u32 %s47, 1
        %s604 = scalar_lea.sflag [#allocation3], %s603
        %s605 = sand.u32 %s47, 1
        %s606 = smul.addr %s605, 16
        %s607 = scalar_lea.vmem [#allocation2], %s606
        %p608 = pneg %p60
        %p609 = pneg %p57
        %s610 = sand.u32 %s39, 1
        %s611 = scalar_lea.sflag [#allocation7], %s610
        %s612 = sand.u32 %s73, 1
        %s613 = smul.addr %s612, 16
        %s614 = scalar_lea.vmem [#allocation6], %s613
        %p615 = pneg %p86
        %p616 = pneg %p83
        %p617 = pneg %p107
        %p618 = pneg %p104
        %p619 = pneg %p128
        %p620 = pneg %p125
        %p621 = pneg %p149
        %p622 = pneg %p146
        %p623 = pneg %p170
        %p624 = pneg %p167
        %p625 = pneg %p191
        %p626 = pneg %p188
        %p627 = pneg %p212
        %p628 = pneg %p209
        %p629 = pneg %p233
        %p630 = pneg %p230
        %p631 = pneg %p254
        %p632 = pneg %p251
        %p633 = pneg %p275
        %p634 = pneg %p272
        %p635 = pneg %p296
        %p636 = pneg %p293
        %p637 = pneg %p317
        %p638 = pneg %p314
        %p639 = pneg %p338
        %p640 = pneg %p335
        %p641 = pneg %p364
        %p642 = pneg %p361
        %s643 = sand.u32 %s351, 1
        %s644 = scalar_lea.sflag [#allocation4], %s643
        %s645 = sand.u32 %s351, 1
        %s646 = smul.addr %s645, 16
        %s647 = scalar_lea.vmem [#allocation21], %s646
        %v648 = vld [vmem:[%s552] sm:$0xff]
        %v649 = vld [vmem:[%s552 + $0x8] sm:$0xff]
        %v650 = vld [vmem:[%s561] sm:$0xff]
        %v651 = vld [vmem:[%s561 + $0x8] sm:$0xff]
        %v652 = vld [vmem:[#allocation8] sm:$0xff]
        %v653 = vld [vmem:[#allocation8 + $0x8] sm:$0xff]
        %654 = vxpose.xlu0.b32.start [1/16] %v648, 128
        %655 = vxpose.xlu0.b32.cont [2/16] %v649, 128
        %656 = vxpose.xlu0.b32.cont [3/16] 0.0, 128
        %657 = vxpose.xlu0.b32.cont [4/16] 0.0, 128
        %658 = vxpose.xlu0.b32.cont [5/16] 0.0, 128
        %659 = vxpose.xlu0.b32.cont [6/16] 0.0, 128
        %660 = vxpose.xlu0.b32.cont [7/16] 0.0, 128
        %661 = vxpose.xlu0.b32.cont [8/16] 0.0, 128
        %662 = vxpose.xlu0.b32.cont [9/16] 0.0, 128
        %663 = vxpose.xlu0.b32.cont [10/16] 0.0, 128
        %664 = vxpose.xlu0.b32.cont [11/16] 0.0, 128
        %665 = vxpose.xlu0.b32.cont [12/16] 0.0, 128
        %666 = vxpose.xlu0.b32.cont [13/16] 0.0, 128
        %667 = vxpose.xlu0.b32.cont [14/16] 0.0, 128
        %668 = vxpose.xlu0.b32.cont [15/16] 0.0, 128
        %669 = vxpose.xlu0.b32.end [16/16] 0.0, 128
        %v670 = vpop.trf.xlu0
        %v671 = vpop.trf.xlu0
        %v672 = vpop.trf.xlu0
        %v673 = vpop.trf.xlu0
        %v674 = vpop.trf.xlu0
        %v675 = vpop.trf.xlu0
        %v676 = vpop.trf.xlu0
        %v677 = vpop.trf.xlu0
        %v678 = vpop.trf.xlu0
        %v679 = vpop.trf.xlu0
        %v680 = vpop.trf.xlu0
        %v681 = vpop.trf.xlu0
        %v682 = vpop.trf.xlu0
        %v683 = vpop.trf.xlu0
        %v684 = vpop.trf.xlu0
        %v685 = vpop.trf.xlu0
        %vm686 = vcmask 130048
        %v688 = vsel %vm686, %v670, 0
        %v691 = vsel %vm686, %v671, 0
        %v694 = vsel %vm686, %v652, 0
        %v697 = vsel %vm686, %v653, 0
        %699 = vmatprep.subr.mxu0 0.0
        %700 = vmatpush1.xpose.msra.mxu0 %v694
        %701 = vmatprep.subr.mxu0 0.0
        %702 = vmatpush1.xpose.msra.mxu0 %v697
        %703 = vmatprep.subr.mxu0 0.0
        %704 = vmatpush1.xpose.msra.mxu0 0.0
        %705 = vmatprep.subr.mxu0 0.0
        %706 = vmatpush1.xpose.msra.mxu0 0.0
        %707 = vmatprep.subr.mxu0 0.0
        %708 = vmatpush1.xpose.msra.mxu0 0.0
        %709 = vmatprep.subr.mxu0 0.0
        %710 = vmatpush1.xpose.msra.mxu0 0.0
        %711 = vmatprep.subr.mxu0 0.0
        %712 = vmatpush1.xpose.msra.mxu0 0.0
        %713 = vmatprep.subr.mxu0 0.0
        %714 = vmatpush1.xpose.msra.mxu0 0.0
        %715 = vmatprep.subr.mxu0 0.0
        %716 = vmatpush1.xpose.msra.mxu0 0.0
        %717 = vmatprep.subr.mxu0 0.0
        %718 = vmatpush1.xpose.msra.mxu0 0.0
        %719 = vmatprep.subr.mxu0 0.0
        %720 = vmatpush1.xpose.msra.mxu0 0.0
        %721 = vmatprep.subr.mxu0 0.0
        %722 = vmatpush1.xpose.msra.mxu0 0.0
        %723 = vmatprep.subr.mxu0 0.0
        %724 = vmatpush1.xpose.msra.mxu0 0.0
        %725 = vmatprep.subr.mxu0 0.0
        %726 = vmatpush1.xpose.msra.mxu0 0.0
        %727 = vmatprep.subr.mxu0 0.0
        %728 = vmatpush1.xpose.msra.mxu0 0.0
        %729 = vmatprep.subr.mxu0 0.0
        %730 = vmatpush1.xpose.msra.mxu0 0.0
        %731 = vmatprep.subr.mxu0 0.0
        %732 = vmatpush1.xpose.msra.mxu0 0.0
        %733 = vmatprep.subr.mxu0 0.0
        %734 = vmatpush1.xpose.msra.mxu0 0.0
        %735 = vmatprep.subr.mxu0 0.0
        %736 = vmatpush1.xpose.msra.mxu0 0.0
        %737 = vmatprep.subr.mxu0 0.0
        %738 = vmatpush1.xpose.msra.mxu0 0.0
        %739 = vmatprep.subr.mxu0 0.0
        %740 = vmatpush1.xpose.msra.mxu0 0.0
        %741 = vmatprep.subr.mxu0 0.0
        %742 = vmatpush1.xpose.msra.mxu0 0.0
        %743 = vmatprep.subr.mxu0 0.0
        %744 = vmatpush1.xpose.msra.mxu0 0.0
        %745 = vmatprep.subr.mxu0 0.0
        %746 = vmatpush1.xpose.msra.mxu0 0.0
        %747 = vmatprep.subr.mxu0 0.0
        %748 = vmatpush1.xpose.msra.mxu0 0.0
        %749 = vmatprep.subr.mxu0 0.0
        %750 = vmatpush1.xpose.msra.mxu0 0.0
        %751 = vmatprep.subr.mxu0 0.0
        %752 = vmatpush1.xpose.msra.mxu0 0.0
        %753 = vmatprep.subr.mxu0 0.0
        %754 = vmatpush1.xpose.msra.mxu0 0.0
        %755 = vmatprep.subr.mxu0 0.0
        %756 = vmatpush1.xpose.msra.mxu0 0.0
        %757 = vmatprep.subr.mxu0 0.0
        %758 = vmatpush1.xpose.msra.mxu0 0.0
        %759 = vmatprep.subr.mxu0 0.0
        %760 = vmatpush1.xpose.msra.mxu0 0.0
        %761 = vmatprep.subr.mxu0 0.0
        %762 = vmatpush1.xpose.msra.mxu0 0.0
        %763 = vmatprep.mubr.f32.mxu0 0.0
        %764 = vmatmul.mubr.f32.gmra.mrb[0].mxu0 %v688
        %v765 = vpop.f32.mrb[0].mxu0
        %v766 = vadd.f32 0.0, %v765
        %v767 = vpop.f32.mrb[0].mxu0
        %768 = vmatprep.mubr.f32.mxu0 0.0
        %769 = vmatmul.mubr.f32.gmra.mrb[0].mxu0 %v691
        %v770 = vpop.f32.mrb[0].mxu0
        %v771 = vadd.f32 0.0, %v770
        %v772 = vpop.f32.mrb[0].mxu0
        %773 = vdwg.mxu0
        %v774 = vld [vmem:[#allocation9] sm:$0x1]
        %v776 = vlaneseq
        %v777 = vshrl.u32 %v776, 7
        %v778 = vsub.s32 0, %v777
        %v779 = vrot.slane %v774, %v778
        %v781 = vmul.f32 %v766, %v779
        %v782 = vmul.f32 %v771, %v779
        %v783 = vld [vmem:[#allocation11] sm:$0x1]
        %v785 = vlaneseq
        %v786 = vshrl.u32 %v785, 7
        %v787 = vsub.s32 0, %v786
        %v788 = vrot.slane %v783, %v787
        %v790 = vadd.f32 %v781, %v788
        %v791 = vadd.f32 %v782, %v788
        %v792 = vld [vmem:[#allocation12] sm:$0xff]
        %v793 = vld [vmem:[#allocation12 + $0x8] sm:$0xff]
        %794 = vxpose.xlu0.b32.start [1/16] %v650, 128
        %795 = vxpose.xlu0.b32.cont [2/16] %v651, 128
        %796 = vxpose.xlu0.b32.cont [3/16] 0.0, 128
        %797 = vxpose.xlu0.b32.cont [4/16] 0.0, 128
        %798 = vxpose.xlu0.b32.cont [5/16] 0.0, 128
        %799 = vxpose.xlu0.b32.cont [6/16] 0.0, 128
        %800 = vxpose.xlu0.b32.cont [7/16] 0.0, 128
        %801 = vxpose.xlu0.b32.cont [8/16] 0.0, 128
        %802 = vxpose.xlu0.b32.cont [9/16] 0.0, 128
        %803 = vxpose.xlu0.b32.cont [10/16] 0.0, 128
        %804 = vxpose.xlu0.b32.cont [11/16] 0.0, 128
        %805 = vxpose.xlu0.b32.cont [12/16] 0.0, 128
        %806 = vxpose.xlu0.b32.cont [13/16] 0.0, 128
        %807 = vxpose.xlu0.b32.cont [14/16] 0.0, 128
        %808 = vxpose.xlu0.b32.cont [15/16] 0.0, 128
        %809 = vxpose.xlu0.b32.end [16/16] 0.0, 128
        %v810 = vpop.trf.xlu0
        %v811 = vpop.trf.xlu0
        %v812 = vpop.trf.xlu0
        %v813 = vpop.trf.xlu0
        %v814 = vpop.trf.xlu0
        %v815 = vpop.trf.xlu0
        %v816 = vpop.trf.xlu0
        %v817 = vpop.trf.xlu0
        %v818 = vpop.trf.xlu0
        %v819 = vpop.trf.xlu0
        %v820 = vpop.trf.xlu0
        %v821 = vpop.trf.xlu0
        %v822 = vpop.trf.xlu0
        %v823 = vpop.trf.xlu0
        %v824 = vpop.trf.xlu0
        %v825 = vpop.trf.xlu0
        %v827 = vsel %vm686, %v810, 0
        %v830 = vsel %vm686, %v811, 0
        %v833 = vsel %vm686, %v792, 0
        %v836 = vsel %vm686, %v793, 0
        %838 = vmatprep.subr.mxu0 0.0
        %839 = vmatpush1.xpose.msra.mxu0 %v833
        %840 = vmatprep.subr.mxu0 0.0
        %841 = vmatpush1.xpose.msra.mxu0 %v836
        %842 = vmatprep.subr.mxu0 0.0
        %843 = vmatpush1.xpose.msra.mxu0 0.0
        %844 = vmatprep.subr.mxu0 0.0
        %845 = vmatpush1.xpose.msra.mxu0 0.0
        %846 = vmatprep.subr.mxu0 0.0
        %847 = vmatpush1.xpose.msra.mxu0 0.0
        %848 = vmatprep.subr.mxu0 0.0
        %849 = vmatpush1.xpose.msra.mxu0 0.0
        %850 = vmatprep.subr.mxu0 0.0
        %851 = vmatpush1.xpose.msra.mxu0 0.0
        %852 = vmatprep.subr.mxu0 0.0
        %853 = vmatpush1.xpose.msra.mxu0 0.0
        %854 = vmatprep.subr.mxu0 0.0
        %855 = vmatpush1.xpose.msra.mxu0 0.0
        %856 = vmatprep.subr.mxu0 0.0
        %857 = vmatpush1.xpose.msra.mxu0 0.0
        %858 = vmatprep.subr.mxu0 0.0
        %859 = vmatpush1.xpose.msra.mxu0 0.0
        %860 = vmatprep.subr.mxu0 0.0
        %861 = vmatpush1.xpose.msra.mxu0 0.0
        %862 = vmatprep.subr.mxu0 0.0
        %863 = vmatpush1.xpose.msra.mxu0 0.0
        %864 = vmatprep.subr.mxu0 0.0
        %865 = vmatpush1.xpose.msra.mxu0 0.0
        %866 = vmatprep.subr.mxu0 0.0
        %867 = vmatpush1.xpose.msra.mxu0 0.0
        %868 = vmatprep.subr.mxu0 0.0
        %869 = vmatpush1.xpose.msra.mxu0 0.0
        %870 = vmatprep.subr.mxu0 0.0
        %871 = vmatpush1.xpose.msra.mxu0 0.0
        %872 = vmatprep.subr.mxu0 0.0
        %873 = vmatpush1.xpose.msra.mxu0 0.0
        %874 = vmatprep.subr.mxu0 0.0
        %875 = vmatpush1.xpose.msra.mxu0 0.0
        %876 = vmatprep.subr.mxu0 0.0
        %877 = vmatpush1.xpose.msra.mxu0 0.0
        %878 = vmatprep.subr.mxu0 0.0
        %879 = vmatpush1.xpose.msra.mxu0 0.0
        %880 = vmatprep.subr.mxu0 0.0
        %881 = vmatpush1.xpose.msra.mxu0 0.0
        %882 = vmatprep.subr.mxu0 0.0
        %883 = vmatpush1.xpose.msra.mxu0 0.0
        %884 = vmatprep.subr.mxu0 0.0
        %885 = vmatpush1.xpose.msra.mxu0 0.0
        %886 = vmatprep.subr.mxu0 0.0
        %887 = vmatpush1.xpose.msra.mxu0 0.0
        %888 = vmatprep.subr.mxu0 0.0
        %889 = vmatpush1.xpose.msra.mxu0 0.0
        %890 = vmatprep.subr.mxu0 0.0
        %891 = vmatpush1.xpose.msra.mxu0 0.0
        %892 = vmatprep.subr.mxu0 0.0
        %893 = vmatpush1.xpose.msra.mxu0 0.0
        %894 = vmatprep.subr.mxu0 0.0
        %895 = vmatpush1.xpose.msra.mxu0 0.0
        %896 = vmatprep.subr.mxu0 0.0
        %897 = vmatpush1.xpose.msra.mxu0 0.0
        %898 = vmatprep.subr.mxu0 0.0
        %899 = vmatpush1.xpose.msra.mxu0 0.0
        %900 = vmatprep.subr.mxu0 0.0
        %901 = vmatpush1.xpose.msra.mxu0 0.0
        %902 = vmatprep.mubr.f32.mxu0 0.0
        %903 = vmatmul.mubr.f32.gmra.mrb[0].mxu0 %v827
        %v904 = vpop.f32.mrb[0].mxu0
        %v905 = vadd.f32 0.0, %v904
        %v906 = vpop.f32.mrb[0].mxu0
        %907 = vmatprep.mubr.f32.mxu0 0.0
        %908 = vmatmul.mubr.f32.gmra.mrb[0].mxu0 %v830
        %v909 = vpop.f32.mrb[0].mxu0
        %v910 = vadd.f32 0.0, %v909
        %v911 = vpop.f32.mrb[0].mxu0
        %912 = vdwg.mxu0
        %v913 = vld [vmem:[#allocation14] sm:$0x1]
        %v915 = vlaneseq
        %v916 = vshrl.u32 %v915, 7
        %v917 = vsub.s32 0, %v916
        %v918 = vrot.slane %v913, %v917
        %v920 = vmul.f32 %v905, %v918
        %v921 = vmul.f32 %v910, %v918
        %v922 = vld [vmem:[#allocation15] sm:$0x1]
        %v924 = vlaneseq
        %v925 = vshrl.u32 %v924, 7
        %v926 = vsub.s32 0, %v925
        %v927 = vrot.slane %v922, %v926
        %v929 = vadd.f32 %v920, %v927
        %v930 = vadd.f32 %v921, %v927
        %s931 = sld [smem:[#allocation20]]
        %s932 = sld [smem:[#allocation20 + $0x1]]
        %s933 = sld [smem:[#allocation20 + $0x2]]
        %v934 = vstv %s931
        %v935 = vmul.f32 %v790, %v934
        %v936 = vmul.f32 %v791, %v934
        %v937 = vstv %s932
        %v938 = vmul.f32 %v790, %v937
        %v939 = vmul.f32 %v791, %v937
        %v940 = vstv %s933
        %v941 = vmul.f32 %v790, %v940
        %v942 = vmul.f32 %v791, %v940
        %v943 = vld [vmem:[%s8] sm:$0xff]
        %v944 = vld [vmem:[%s8 + $0x8] sm:$0xff]
        %946 = vset.pattern.permute.xlu0 0
        %947 = vperm.xlu0 %946, %v935
        %v948 = vpop.permute.xlu0 %947
        %951 = vset.pattern.permute.xlu0 0
        %952 = vperm.xlu0 %951, %v936
        %v953 = vpop.permute.xlu0 %952
        %v955 = vmul.f32 %v948, %v943
        %v956 = vmul.f32 %v953, %v944
        %959 = vrot.lane.b32.xlu0 %v790, 124
        %v960 = vpop.permute.xlu0 %959
        %961 = vrot.lane.b32.xlu0 %v791, 124
        %v962 = vpop.permute.xlu0 %961
        %vm963 = vcmask 31744
        %v965 = vsel %vm963, %v941, 0
        %v968 = vsel %vm963, %v942, 0
        %v970 = vsel %vm963, %v960, 0
        %v972 = vsel %vm963, %v962, 0
        %974 = vmatprep.subr.mxu0 0.0
        %975 = vmatpush1.xpose.msra.mxu0 %v970
        %976 = vmatprep.subr.mxu0 0.0
        %977 = vmatpush1.xpose.msra.mxu0 %v972
        %978 = vmatprep.subr.mxu0 0.0
        %979 = vmatpush1.xpose.msra.mxu0 0.0
        %980 = vmatprep.subr.mxu0 0.0
        %981 = vmatpush1.xpose.msra.mxu0 0.0
        %982 = vmatprep.subr.mxu0 0.0
        %983 = vmatpush1.xpose.msra.mxu0 0.0
        %984 = vmatprep.subr.mxu0 0.0
        %985 = vmatpush1.xpose.msra.mxu0 0.0
        %986 = vmatprep.subr.mxu0 0.0
        %987 = vmatpush1.xpose.msra.mxu0 0.0
        %988 = vmatprep.subr.mxu0 0.0
        %989 = vmatpush1.xpose.msra.mxu0 0.0
        %990 = vmatprep.subr.mxu0 0.0
        %991 = vmatpush1.xpose.msra.mxu0 0.0
        %992 = vmatprep.subr.mxu0 0.0
        %993 = vmatpush1.xpose.msra.mxu0 0.0
        %994 = vmatprep.subr.mxu0 0.0
        %995 = vmatpush1.xpose.msra.mxu0 0.0
        %996 = vmatprep.subr.mxu0 0.0
        %997 = vmatpush1.xpose.msra.mxu0 0.0
        %998 = vmatprep.subr.mxu0 0.0
        %999 = vmatpush1.xpose.msra.mxu0 0.0
        %1000 = vmatprep.subr.mxu0 0.0
        %1001 = vmatpush1.xpose.msra.mxu0 0.0
        %1002 = vmatprep.subr.mxu0 0.0
        %1003 = vmatpush1.xpose.msra.mxu0 0.0
        %1004 = vmatprep.subr.mxu0 0.0
        %1005 = vmatpush1.xpose.msra.mxu0 0.0
        %1006 = vmatprep.subr.mxu0 0.0
        %1007 = vmatpush1.xpose.msra.mxu0 0.0
        %1008 = vmatprep.subr.mxu0 0.0
        %1009 = vmatpush1.xpose.msra.mxu0 0.0
        %1010 = vmatprep.subr.mxu0 0.0
        %1011 = vmatpush1.xpose.msra.mxu0 0.0
        %1012 = vmatprep.subr.mxu0 0.0
        %1013 = vmatpush1.xpose.msra.mxu0 0.0
        %1014 = vmatprep.subr.mxu0 0.0
        %1015 = vmatpush1.xpose.msra.mxu0 0.0
        %1016 = vmatprep.subr.mxu0 0.0
        %1017 = vmatpush1.xpose.msra.mxu0 0.0
        %1018 = vmatprep.subr.mxu0 0.0
        %1019 = vmatpush1.xpose.msra.mxu0 0.0
        %1020 = vmatprep.subr.mxu0 0.0
        %1021 = vmatpush1.xpose.msra.mxu0 0.0
        %1022 = vmatprep.subr.mxu0 0.0
        %1023 = vmatpush1.xpose.msra.mxu0 0.0
        %1024 = vmatprep.subr.mxu0 0.0
        %1025 = vmatpush1.xpose.msra.mxu0 0.0
        %1026 = vmatprep.subr.mxu0 0.0
        %1027 = vmatpush1.xpose.msra.mxu0 0.0
        %1028 = vmatprep.subr.mxu0 0.0
        %1029 = vmatpush1.xpose.msra.mxu0 0.0
        %1030 = vmatprep.subr.mxu0 0.0
        %1031 = vmatpush1.xpose.msra.mxu0 0.0
        %1032 = vmatprep.subr.mxu0 0.0
        %1033 = vmatpush1.xpose.msra.mxu0 0.0
        %1034 = vmatprep.subr.mxu0 0.0
        %1035 = vmatpush1.xpose.msra.mxu0 0.0
        %1036 = vmatprep.subr.mxu0 0.0
        %1037 = vmatpush1.xpose.msra.mxu0 0.0
        %1038 = vmatprep.mubr.f32.mxu0 0.0
        %1039 = vmatmul.mubr.f32.gmra.mrb[0].mxu0 %v965
        %v1040 = vpop.f32.mrb[0].mxu0
        %v1041 = vadd.f32 %v955, %v1040
        %v1042 = vpop.f32.mrb[0].mxu0
        %1043 = vmatprep.mubr.f32.mxu0 0.0
        %1044 = vmatmul.mubr.f32.gmra.mrb[0].mxu0 %v968
        %v1045 = vpop.f32.mrb[0].mxu0
        %v1046 = vadd.f32 %v956, %v1045
        %v1047 = vpop.f32.mrb[0].mxu0
        %1048 = vdwg.mxu0
        %v1049 = vld [vmem:[#allocation17] sm:$0xff]
        %v1050 = vld [vmem:[#allocation17 + $0x8] sm:$0xff]
        %1052 = vset.pattern.permute.xlu0 4
        %1053 = vperm.xlu0 %1052, %v938
        %v1054 = vpop.permute.xlu0 %1053
        %1057 = vset.pattern.permute.xlu0 4
        %1058 = vperm.xlu0 %1057, %v939
        %v1059 = vpop.permute.xlu0 %1058
        %v1061 = vmul.f32 %v1054, %v1049
        %v1062 = vmul.f32 %v1059, %v1050
        %v1063 = vadd.f32 %v1041, %v1061
        %v1064 = vadd.f32 %v1046, %v1062
        %s1065 = scalar_lea.vmem %s8, 16
        %v1066 = vld [vmem:[%s1065] sm:$0xff]
        %v1067 = vld [vmem:[%s1065 + $0x8] sm:$0xff]
        %1068 = vset.pattern.permute.xlu0 1
        %1069 = vperm.xlu0 %1068, %v935
        %v1070 = vpop.permute.xlu0 %1069
        %1072 = vset.pattern.permute.xlu0 1
        %1073 = vperm.xlu0 %1072, %v936
        %v1074 = vpop.permute.xlu0 %1073
        %v1076 = vmul.f32 %v1070, %v1066
        %v1077 = vmul.f32 %v1074, %v1067
        %v1078 = vadd.f32 %v1063, %v1076
        %v1079 = vadd.f32 %v1064, %v1077
        %s1080 = scalar_lea.vmem [#allocation17], 16
        %v1081 = vld [vmem:[%s1080] sm:$0xff]
        %v1082 = vld [vmem:[%s1080 + $0x8] sm:$0xff]
        %1083 = vset.pattern.permute.xlu0 5
        %1084 = vperm.xlu0 %1083, %v938
        %v1085 = vpop.permute.xlu0 %1084
        %1087 = vset.pattern.permute.xlu0 5
        %1088 = vperm.xlu0 %1087, %v939
        %v1089 = vpop.permute.xlu0 %1088
        %v1091 = vmul.f32 %v1085, %v1081
        %v1092 = vmul.f32 %v1089, %v1082
        %v1093 = vadd.f32 %v1078, %v1091
        %v1094 = vadd.f32 %v1079, %v1092
        %s1095 = scalar_lea.vmem %s8, 32
        %v1096 = vld [vmem:[%s1095] sm:$0xff]
        %v1097 = vld [vmem:[%s1095 + $0x8] sm:$0xff]
        %1098 = vset.pattern.permute.xlu0 2
        %1099 = vperm.xlu0 %1098, %v935
        %v1100 = vpop.permute.xlu0 %1099
        %1102 = vset.pattern.permute.xlu0 2
        %1103 = vperm.xlu0 %1102, %v936
        %v1104 = vpop.permute.xlu0 %1103
        %v1106 = vmul.f32 %v1100, %v1096
        %v1107 = vmul.f32 %v1104, %v1097
        %v1108 = vadd.f32 %v1093, %v1106
        %v1109 = vadd.f32 %v1094, %v1107
        %s1110 = scalar_lea.vmem [#allocation17], 32
        %v1111 = vld [vmem:[%s1110] sm:$0xff]
        %v1112 = vld [vmem:[%s1110 + $0x8] sm:$0xff]
        %1113 = vset.pattern.permute.xlu0 6
        %1114 = vperm.xlu0 %1113, %v938
        %v1115 = vpop.permute.xlu0 %1114
        %1117 = vset.pattern.permute.xlu0 6
        %1118 = vperm.xlu0 %1117, %v939
        %v1119 = vpop.permute.xlu0 %1118
        %v1121 = vmul.f32 %v1115, %v1111
        %v1122 = vmul.f32 %v1119, %v1112
        %v1123 = vadd.f32 %v1108, %v1121
        %v1124 = vadd.f32 %v1109, %v1122
        %s1125 = scalar_lea.vmem %s8, 48
        %v1126 = vld [vmem:[%s1125] sm:$0xff]
        %v1127 = vld [vmem:[%s1125 + $0x8] sm:$0xff]
        %1128 = vset.pattern.permute.xlu0 3
        %1129 = vperm.xlu0 %1128, %v935
        %v1130 = vpop.permute.xlu0 %1129
        %1132 = vset.pattern.permute.xlu0 3
        %1133 = vperm.xlu0 %1132, %v936
        %v1134 = vpop.permute.xlu0 %1133
        %v1136 = vmul.f32 %v1130, %v1126
        %v1137 = vmul.f32 %v1134, %v1127
        %v1138 = vadd.f32 %v1123, %v1136
        %v1139 = vadd.f32 %v1124, %v1137
        %s1140 = scalar_lea.vmem [#allocation17], 48
        %v1141 = vld [vmem:[%s1140] sm:$0xff]
        %v1142 = vld [vmem:[%s1140 + $0x8] sm:$0xff]
        %1143 = vset.pattern.permute.xlu0 7
        %1144 = vperm.xlu0 %1143, %v938
        %v1145 = vpop.permute.xlu0 %1144
        %1147 = vset.pattern.permute.xlu0 7
        %1148 = vperm.xlu0 %1147, %v939
        %v1149 = vpop.permute.xlu0 %1148
        %v1151 = vmul.f32 %v1145, %v1141
        %v1152 = vmul.f32 %v1149, %v1142
        %v1153 = vadd.f32 %v1138, %v1151
        %v1154 = vadd.f32 %v1139, %v1152
        %v1155 = vsel %vm686, %v1153, -inf
        %1156 = vmax.xlane.f32.xlu0 %v1155
        %v1157 = vpop.xlane.xlu0 %1156
        %v1158 = vsel %vm686, %v1154, -inf
        %1159 = vmax.xlane.f32.xlu0 %v1158
        %v1160 = vpop.xlane.xlu0 %1159
        %v1161 = vsub.f32 %v1153, %v1157
        %v1162 = vsub.f32 %v1154, %v1160
        %v1163 = vmul.f32 %v1161, 1.442695
        %v1164 = vpow.pop %v1163
        %v1165 = vmul.f32 %v1162, 1.442695
        %v1166 = vpow.pop %v1165
        %v1167 = vsel %vm686, %v1164, 0.0
        %1168 = vadd.xlane.f32.xlu0 %v1167
        %v1169 = vpop.xlane.xlu0 %1168
        %v1170 = vsel %vm686, %v1166, 0.0
        %1171 = vadd.xlane.f32.xlu0 %v1170
        %v1172 = vpop.xlane.xlu0 %1171
        %v1173 = vrcp.pop %v1169
        %v1174 = vrcp.pop %v1172
        %v1175 = vmul.f32 %v1164, %v1173
        %v1176 = vmul.f32 %v1166, %v1174
        %1177 = vxpose.xlu0.b32.start [1/16] %v929, 128
        %1178 = vxpose.xlu0.b32.cont [2/16] %v930, 128
        %1179 = vxpose.xlu0.b32.cont [3/16] 0.0, 128
        %1180 = vxpose.xlu0.b32.cont [4/16] 0.0, 128
        %1181 = vxpose.xlu0.b32.cont [5/16] 0.0, 128
        %1182 = vxpose.xlu0.b32.cont [6/16] 0.0, 128
        %1183 = vxpose.xlu0.b32.cont [7/16] 0.0, 128
        %1184 = vxpose.xlu0.b32.cont [8/16] 0.0, 128
        %1185 = vxpose.xlu0.b32.cont [9/16] 0.0, 128
        %1186 = vxpose.xlu0.b32.cont [10/16] 0.0, 128
        %1187 = vxpose.xlu0.b32.cont [11/16] 0.0, 128
        %1188 = vxpose.xlu0.b32.cont [12/16] 0.0, 128
        %1189 = vxpose.xlu0.b32.cont [13/16] 0.0, 128
        %1190 = vxpose.xlu0.b32.cont [14/16] 0.0, 128
        %1191 = vxpose.xlu0.b32.cont [15/16] 0.0, 128
        %1192 = vxpose.xlu0.b32.end [16/16] 0.0, 128
        %v1193 = vpop.trf.xlu0
        %v1194 = vpop.trf.xlu0
        %v1195 = vpop.trf.xlu0
        %v1196 = vpop.trf.xlu0
        %v1197 = vpop.trf.xlu0
        %v1198 = vpop.trf.xlu0
        %v1199 = vpop.trf.xlu0
        %v1200 = vpop.trf.xlu0
        %v1201 = vpop.trf.xlu0
        %v1202 = vpop.trf.xlu0
        %v1203 = vpop.trf.xlu0
        %v1204 = vpop.trf.xlu0
        %v1205 = vpop.trf.xlu0
        %v1206 = vpop.trf.xlu0
        %v1207 = vpop.trf.xlu0
        %v1208 = vpop.trf.xlu0
        %v1210 = vsel %vm686, %v1193, 0
        %v1213 = vsel %vm686, %v1175, 0
        %v1216 = vsel %vm686, %v1176, 0
        %1218 = vmatprep.subr.mxu0 0.0
        %1219 = vmatpush1.xpose.msra.mxu0 %v1213
        %1220 = vmatprep.subr.mxu0 0.0
        %1221 = vmatpush1.xpose.msra.mxu0 %v1216
        %1222 = vmatprep.subr.mxu0 0.0
        %1223 = vmatpush1.xpose.msra.mxu0 0.0
        %1224 = vmatprep.subr.mxu0 0.0
        %1225 = vmatpush1.xpose.msra.mxu0 0.0
        %1226 = vmatprep.subr.mxu0 0.0
        %1227 = vmatpush1.xpose.msra.mxu0 0.0
        %1228 = vmatprep.subr.mxu0 0.0
        %1229 = vmatpush1.xpose.msra.mxu0 0.0
        %1230 = vmatprep.subr.mxu0 0.0
        %1231 = vmatpush1.xpose.msra.mxu0 0.0
        %1232 = vmatprep.subr.mxu0 0.0
        %1233 = vmatpush1.xpose.msra.mxu0 0.0
        %1234 = vmatprep.subr.mxu0 0.0
        %1235 = vmatpush1.xpose.msra.mxu0 0.0
        %1236 = vmatprep.subr.mxu0 0.0
        %1237 = vmatpush1.xpose.msra.mxu0 0.0
        %1238 = vmatprep.subr.mxu0 0.0
        %1239 = vmatpush1.xpose.msra.mxu0 0.0
        %1240 = vmatprep.subr.mxu0 0.0
        %1241 = vmatpush1.xpose.msra.mxu0 0.0
        %1242 = vmatprep.subr.mxu0 0.0
        %1243 = vmatpush1.xpose.msra.mxu0 0.0
        %1244 = vmatprep.subr.mxu0 0.0
        %1245 = vmatpush1.xpose.msra.mxu0 0.0
        %1246 = vmatprep.subr.mxu0 0.0
        %1247 = vmatpush1.xpose.msra.mxu0 0.0
        %1248 = vmatprep.subr.mxu0 0.0
        %1249 = vmatpush1.xpose.msra.mxu0 0.0
        %1250 = vmatprep.subr.mxu0 0.0
        %1251 = vmatpush1.xpose.msra.mxu0 0.0
        %1252 = vmatprep.subr.mxu0 0.0
        %1253 = vmatpush1.xpose.msra.mxu0 0.0
        %1254 = vmatprep.subr.mxu0 0.0
        %1255 = vmatpush1.xpose.msra.mxu0 0.0
        %1256 = vmatprep.subr.mxu0 0.0
        %1257 = vmatpush1.xpose.msra.mxu0 0.0
        %1258 = vmatprep.subr.mxu0 0.0
        %1259 = vmatpush1.xpose.msra.mxu0 0.0
        %1260 = vmatprep.subr.mxu0 0.0
        %1261 = vmatpush1.xpose.msra.mxu0 0.0
        %1262 = vmatprep.subr.mxu0 0.0
        %1263 = vmatpush1.xpose.msra.mxu0 0.0
        %1264 = vmatprep.subr.mxu0 0.0
        %1265 = vmatpush1.xpose.msra.mxu0 0.0
        %1266 = vmatprep.subr.mxu0 0.0
        %1267 = vmatpush1.xpose.msra.mxu0 0.0
        %1268 = vmatprep.subr.mxu0 0.0
        %1269 = vmatpush1.xpose.msra.mxu0 0.0
        %1270 = vmatprep.subr.mxu0 0.0
        %1271 = vmatpush1.xpose.msra.mxu0 0.0
        %1272 = vmatprep.subr.mxu0 0.0
        %1273 = vmatpush1.xpose.msra.mxu0 0.0
        %1274 = vmatprep.subr.mxu0 0.0
        %1275 = vmatpush1.xpose.msra.mxu0 0.0
        %1276 = vmatprep.subr.mxu0 0.0
        %1277 = vmatpush1.xpose.msra.mxu0 0.0
        %1278 = vmatprep.subr.mxu0 0.0
        %1279 = vmatpush1.xpose.msra.mxu0 0.0
        %1280 = vmatprep.subr.mxu0 0.0
        %1281 = vmatpush1.xpose.msra.mxu0 0.0
        %1282 = vmatprep.mubr.f32.mxu0 0.0
        %1283 = vmatmul.mubr.f32.gmra.mrb[0].mxu0 %v1210
        %v1284 = vpop.f32.mrb[0].mxu0
        %v1285 = vadd.f32 0.0, %v1284
        %v1286 = vpop.f32.mrb[0].mxu0
        %1287 = vdwg.mxu0
        %v1288 = vld [vmem:[#allocation18] sm:$0xff]
        %v1289 = vld [vmem:[#allocation18 + $0x8] sm:$0xff]
        %v1290 = vld [vmem:[#allocation18 + $0x10] sm:$0xff]
        %v1291 = vld [vmem:[#allocation18 + $0x18] sm:$0xff]
        %v1292 = vld [vmem:[#allocation18 + $0x20] sm:$0xff]
        %v1293 = vld [vmem:[#allocation18 + $0x28] sm:$0xff]
        %v1294 = vld [vmem:[#allocation18 + $0x30] sm:$0xff]
        %v1295 = vld [vmem:[#allocation18 + $0x38] sm:$0xff]
        %v1296 = vld [vmem:[#allocation18 + $0x40] sm:$0xff]
        %v1297 = vld [vmem:[#allocation18 + $0x48] sm:$0xff]
        %v1298 = vld [vmem:[#allocation18 + $0x50] sm:$0xff]
        %v1299 = vld [vmem:[#allocation18 + $0x58] sm:$0xff]
        %v1300 = vld [vmem:[#allocation18 + $0x60] sm:$0xff]
        %v1301 = vld [vmem:[#allocation18 + $0x68] sm:$0xff]
        %v1302 = vld [vmem:[#allocation18 + $0x70] sm:$0xff]
        %v1303 = vld [vmem:[#allocation18 + $0x78] sm:$0xff]
        %v1304 = vmul.f32 %v1175, %v1288
        %v1305 = vmul.f32 %v1176, %v1289
        %v1306 = vmul.f32 %v1175, %v1290
        %v1307 = vmul.f32 %v1176, %v1291
        %v1308 = vmul.f32 %v1175, %v1292
        %v1309 = vmul.f32 %v1176, %v1293
        %v1310 = vmul.f32 %v1175, %v1294
        %v1311 = vmul.f32 %v1176, %v1295
        %v1312 = vmul.f32 %v1175, %v1296
        %v1313 = vmul.f32 %v1176, %v1297
        %v1314 = vmul.f32 %v1175, %v1298
        %v1315 = vmul.f32 %v1176, %v1299
        %v1316 = vmul.f32 %v1175, %v1300
        %v1317 = vmul.f32 %v1176, %v1301
        %v1318 = vmul.f32 %v1175, %v1302
        %v1319 = vmul.f32 %v1176, %v1303
        %v1320 = vsel %vm686, %v1304, 0.0
        %1321 = vadd.xlane.f32.xlu0 %v1320
        %v1322 = vpop.xlane.xlu0 %1321
        %v1323 = vsel %vm686, %v1305, 0.0
        %1324 = vadd.xlane.f32.xlu0 %v1323
        %v1325 = vpop.xlane.xlu0 %1324
        %v1326 = vsel %vm686, %v1306, 0.0
        %1327 = vadd.xlane.f32.xlu0 %v1326
        %v1328 = vpop.xlane.xlu0 %1327
        %v1329 = vsel %vm686, %v1307, 0.0
        %1330 = vadd.xlane.f32.xlu0 %v1329
        %v1331 = vpop.xlane.xlu0 %1330
        %v1332 = vsel %vm686, %v1308, 0.0
        %1333 = vadd.xlane.f32.xlu0 %v1332
        %v1334 = vpop.xlane.xlu0 %1333
        %v1335 = vsel %vm686, %v1309, 0.0
        %1336 = vadd.xlane.f32.xlu0 %v1335
        %v1337 = vpop.xlane.xlu0 %1336
        %v1338 = vsel %vm686, %v1310, 0.0
        %1339 = vadd.xlane.f32.xlu0 %v1338
        %v1340 = vpop.xlane.xlu0 %1339
        %v1341 = vsel %vm686, %v1311, 0.0
        %1342 = vadd.xlane.f32.xlu0 %v1341
        %v1343 = vpop.xlane.xlu0 %1342
        %v1344 = vsel %vm686, %v1312, 0.0
        %1345 = vadd.xlane.f32.xlu0 %v1344
        %v1346 = vpop.xlane.xlu0 %1345
        %v1347 = vsel %vm686, %v1313, 0.0
        %1348 = vadd.xlane.f32.xlu0 %v1347
        %v1349 = vpop.xlane.xlu0 %1348
        %v1350 = vsel %vm686, %v1314, 0.0
        %1351 = vadd.xlane.f32.xlu0 %v1350
        %v1352 = vpop.xlane.xlu0 %1351
        %v1353 = vsel %vm686, %v1315, 0.0
        %1354 = vadd.xlane.f32.xlu0 %v1353
        %v1355 = vpop.xlane.xlu0 %1354
        %v1356 = vsel %vm686, %v1316, 0.0
        %1357 = vadd.xlane.f32.xlu0 %v1356
        %v1358 = vpop.xlane.xlu0 %1357
        %v1359 = vsel %vm686, %v1317, 0.0
        %1360 = vadd.xlane.f32.xlu0 %v1359
        %v1361 = vpop.xlane.xlu0 %1360
        %v1362 = vsel %vm686, %v1318, 0.0
        %1363 = vadd.xlane.f32.xlu0 %v1362
        %v1364 = vpop.xlane.xlu0 %1363
        %v1365 = vsel %vm686, %v1319, 0.0
        %1366 = vadd.xlane.f32.xlu0 %v1365
        %v1367 = vpop.xlane.xlu0 %1366
        %v1368 = vld [vmem:[%s12] sm:$0xff]
        %1370 = vset.pattern.permute.xlu0 0
        %1371 = vperm.xlu0 %1370, %v1368
        %v1372 = vpop.permute.xlu0 %1371
        %v1373 = vlaneseq
        %v1374 = vshrl.u32 %v1373, 7
        %v1375 = vsub.s32 0, %v1374
        %v1376 = vrot.slane %v1372, %v1375
        %v1377 = vlaneseq
        %v1378 = vshrl.u32 %v1377, 7
        %v1379 = vsub.s32 1, %v1378
        %v1380 = vrot.slane %v1372, %v1379
        %v1381 = vlaneseq
        %v1382 = vshrl.u32 %v1381, 7
        %v1383 = vsub.s32 2, %v1382
        %v1384 = vrot.slane %v1372, %v1383
        %v1385 = vlaneseq
        %v1386 = vshrl.u32 %v1385, 7
        %v1387 = vsub.s32 3, %v1386
        %v1388 = vrot.slane %v1372, %v1387
        %v1389 = vlaneseq
        %v1390 = vshrl.u32 %v1389, 7
        %v1391 = vsub.s32 4, %v1390
        %v1392 = vrot.slane %v1372, %v1391
        %v1393 = vlaneseq
        %v1394 = vshrl.u32 %v1393, 7
        %v1395 = vsub.s32 5, %v1394
        %v1396 = vrot.slane %v1372, %v1395
        %v1397 = vlaneseq
        %v1398 = vshrl.u32 %v1397, 7
        %v1399 = vsub.s32 6, %v1398
        %v1400 = vrot.slane %v1372, %v1399
        %v1401 = vlaneseq
        %v1402 = vshrl.u32 %v1401, 7
        %v1403 = vsub.s32 7, %v1402
        %v1404 = vrot.slane %v1372, %v1403
        %v1413 = vmul.f32 %v1322, %v1376
        %v1414 = vmul.f32 %v1325, %v1376
        %v1415 = vmul.f32 %v1328, %v1380
        %v1416 = vmul.f32 %v1331, %v1380
        %v1417 = vmul.f32 %v1334, %v1384
        %v1418 = vmul.f32 %v1337, %v1384
        %v1419 = vmul.f32 %v1340, %v1388
        %v1420 = vmul.f32 %v1343, %v1388
        %v1421 = vmul.f32 %v1346, %v1392
        %v1422 = vmul.f32 %v1349, %v1392
        %v1423 = vmul.f32 %v1352, %v1396
        %v1424 = vmul.f32 %v1355, %v1396
        %v1425 = vmul.f32 %v1358, %v1400
        %v1426 = vmul.f32 %v1361, %v1400
        %v1427 = vmul.f32 %v1364, %v1404
        %v1428 = vmul.f32 %v1367, %v1404
        %v1430 = vlaneseq
        %v1431 = vshrl.u32 %v1430, 7
        %v1432 = vsub.s32 0, %v1431
        %v1433 = vrot.slane %v1285, %v1432
        %1435 = vbcast.lane.b32.xlu0 %v1433, 256
        %v1436 = vpop.permute.xlu0 %1435
        %s1438 = sor.u32 256, 8
        %1439 = vbcast.lane.b32.xlu0 %v1433, %s1438
        %v1440 = vpop.permute.xlu0 %1439
        %v1441 = vlaneseq
        %v1442 = vshrl.u32 %v1441, 7
        %v1443 = vsub.s32 1, %v1442
        %v1444 = vrot.slane %v1285, %v1443
        %1446 = vbcast.lane.b32.xlu0 %v1444, 256
        %v1447 = vpop.permute.xlu0 %1446
        %s1449 = sor.u32 256, 8
        %1450 = vbcast.lane.b32.xlu0 %v1444, %s1449
        %v1451 = vpop.permute.xlu0 %1450
        %v1452 = vlaneseq
        %v1453 = vshrl.u32 %v1452, 7
        %v1454 = vsub.s32 2, %v1453
        %v1455 = vrot.slane %v1285, %v1454
        %1457 = vbcast.lane.b32.xlu0 %v1455, 256
        %v1458 = vpop.permute.xlu0 %1457
        %s1460 = sor.u32 256, 8
        %1461 = vbcast.lane.b32.xlu0 %v1455, %s1460
        %v1462 = vpop.permute.xlu0 %1461
        %v1463 = vlaneseq
        %v1464 = vshrl.u32 %v1463, 7
        %v1465 = vsub.s32 3, %v1464
        %v1466 = vrot.slane %v1285, %v1465
        %1468 = vbcast.lane.b32.xlu0 %v1466, 256
        %v1469 = vpop.permute.xlu0 %1468
        %s1471 = sor.u32 256, 8
        %1472 = vbcast.lane.b32.xlu0 %v1466, %s1471
        %v1473 = vpop.permute.xlu0 %1472
        %v1474 = vlaneseq
        %v1475 = vshrl.u32 %v1474, 7
        %v1476 = vsub.s32 4, %v1475
        %v1477 = vrot.slane %v1285, %v1476
        %1479 = vbcast.lane.b32.xlu0 %v1477, 256
        %v1480 = vpop.permute.xlu0 %1479
        %s1482 = sor.u32 256, 8
        %1483 = vbcast.lane.b32.xlu0 %v1477, %s1482
        %v1484 = vpop.permute.xlu0 %1483
        %v1485 = vlaneseq
        %v1486 = vshrl.u32 %v1485, 7
        %v1487 = vsub.s32 5, %v1486
        %v1488 = vrot.slane %v1285, %v1487
        %1490 = vbcast.lane.b32.xlu0 %v1488, 256
        %v1491 = vpop.permute.xlu0 %1490
        %s1493 = sor.u32 256, 8
        %1494 = vbcast.lane.b32.xlu0 %v1488, %s1493
        %v1495 = vpop.permute.xlu0 %1494
        %v1496 = vlaneseq
        %v1497 = vshrl.u32 %v1496, 7
        %v1498 = vsub.s32 6, %v1497
        %v1499 = vrot.slane %v1285, %v1498
        %1501 = vbcast.lane.b32.xlu0 %v1499, 256
        %v1502 = vpop.permute.xlu0 %1501
        %s1504 = sor.u32 256, 8
        %1505 = vbcast.lane.b32.xlu0 %v1499, %s1504
        %v1506 = vpop.permute.xlu0 %1505
        %v1507 = vlaneseq
        %v1508 = vshrl.u32 %v1507, 7
        %v1509 = vsub.s32 7, %v1508
        %v1510 = vrot.slane %v1285, %v1509
        %1512 = vbcast.lane.b32.xlu0 %v1510, 256
        %v1513 = vpop.permute.xlu0 %1512
        %s1515 = sor.u32 256, 8
        %1516 = vbcast.lane.b32.xlu0 %v1510, %s1515
        %v1517 = vpop.permute.xlu0 %1516
        %v1534 = vadd.f32 %v1413, %v1436
        %v1535 = vadd.f32 %v1414, %v1440
        %v1536 = vadd.f32 %v1415, %v1447
        %v1537 = vadd.f32 %v1416, %v1451
        %v1538 = vadd.f32 %v1417, %v1458
        %v1539 = vadd.f32 %v1418, %v1462
        %v1540 = vadd.f32 %v1419, %v1469
        %v1541 = vadd.f32 %v1420, %v1473
        %v1542 = vadd.f32 %v1421, %v1480
        %v1543 = vadd.f32 %v1422, %v1484
        %v1544 = vadd.f32 %v1423, %v1491
        %v1545 = vadd.f32 %v1424, %v1495
        %v1546 = vadd.f32 %v1425, %v1502
        %v1547 = vadd.f32 %v1426, %v1506
        %v1548 = vadd.f32 %v1427, %v1513
        %v1549 = vadd.f32 %v1428, %v1517
        %v1550 = vld [vmem:[%s13] sm:$0xff]
        %1552 = vset.pattern.permute.xlu0 0
        %1553 = vperm.xlu0 %1552, %v1550
        %v1554 = vpop.permute.xlu0 %1553
        %v1555 = vlaneseq
        %v1556 = vshrl.u32 %v1555, 7
        %v1557 = vsub.s32 0, %v1556
        %v1558 = vrot.slane %v1554, %v1557
        %v1559 = vlaneseq
        %v1560 = vshrl.u32 %v1559, 7
        %v1561 = vsub.s32 1, %v1560
        %v1562 = vrot.slane %v1554, %v1561
        %v1563 = vlaneseq
        %v1564 = vshrl.u32 %v1563, 7
        %v1565 = vsub.s32 2, %v1564
        %v1566 = vrot.slane %v1554, %v1565
        %v1567 = vlaneseq
        %v1568 = vshrl.u32 %v1567, 7
        %v1569 = vsub.s32 3, %v1568
        %v1570 = vrot.slane %v1554, %v1569
        %v1571 = vlaneseq
        %v1572 = vshrl.u32 %v1571, 7
        %v1573 = vsub.s32 4, %v1572
        %v1574 = vrot.slane %v1554, %v1573
        %v1575 = vlaneseq
        %v1576 = vshrl.u32 %v1575, 7
        %v1577 = vsub.s32 5, %v1576
        %v1578 = vrot.slane %v1554, %v1577
        %v1579 = vlaneseq
        %v1580 = vshrl.u32 %v1579, 7
        %v1581 = vsub.s32 6, %v1580
        %v1582 = vrot.slane %v1554, %v1581
        %v1583 = vlaneseq
        %v1584 = vshrl.u32 %v1583, 7
        %v1585 = vsub.s32 7, %v1584
        %v1586 = vrot.slane %v1554, %v1585
        %v1595 = vadd.f32 %v1534, %v1558
        %v1596 = vadd.f32 %v1535, %v1558
        %v1597 = vadd.f32 %v1536, %v1562
        %v1598 = vadd.f32 %v1537, %v1562
        %v1599 = vadd.f32 %v1538, %v1566
        %v1600 = vadd.f32 %v1539, %v1566
        %v1601 = vadd.f32 %v1540, %v1570
        %v1602 = vadd.f32 %v1541, %v1570
        %v1603 = vadd.f32 %v1542, %v1574
        %v1604 = vadd.f32 %v1543, %v1574
        %v1605 = vadd.f32 %v1544, %v1578
        %v1606 = vadd.f32 %v1545, %v1578
        %v1607 = vadd.f32 %v1546, %v1582
        %v1608 = vadd.f32 %v1547, %v1582
        %v1609 = vadd.f32 %v1548, %v1586
        %v1610 = vadd.f32 %v1549, %v1586
        %1627 = vset.pattern.permute.xlu0 0
        %1628 = vperm.xlu0 %1627, %v1595
        %v1629 = vpop.permute.xlu0 %1628
        %1630 = vset.pattern.permute.xlu0 0
        %1631 = vperm.xlu0 %1630, %v1596
        %v1632 = vpop.permute.xlu0 %1631
        %1633 = vset.pattern.permute.xlu0 0
        %1634 = vperm.xlu0 %1633, %v1597
        %v1635 = vpop.permute.xlu0 %1634
        %1636 = vset.pattern.permute.xlu0 0
        %1637 = vperm.xlu0 %1636, %v1598
        %v1638 = vpop.permute.xlu0 %1637
        %1639 = vset.pattern.permute.xlu0 0
        %1640 = vperm.xlu0 %1639, %v1599
        %v1641 = vpop.permute.xlu0 %1640
        %1642 = vset.pattern.permute.xlu0 0
        %1643 = vperm.xlu0 %1642, %v1600
        %v1644 = vpop.permute.xlu0 %1643
        %1645 = vset.pattern.permute.xlu0 0
        %1646 = vperm.xlu0 %1645, %v1601
        %v1647 = vpop.permute.xlu0 %1646
        %1648 = vset.pattern.permute.xlu0 0
        %1649 = vperm.xlu0 %1648, %v1602
        %v1650 = vpop.permute.xlu0 %1649
        %1651 = vset.pattern.permute.xlu0 0
        %1652 = vperm.xlu0 %1651, %v1603
        %v1653 = vpop.permute.xlu0 %1652
        %1654 = vset.pattern.permute.xlu0 0
        %1655 = vperm.xlu0 %1654, %v1604
        %v1656 = vpop.permute.xlu0 %1655
        %1657 = vset.pattern.permute.xlu0 0
        %1658 = vperm.xlu0 %1657, %v1605
        %v1659 = vpop.permute.xlu0 %1658
        %1660 = vset.pattern.permute.xlu0 0
        %1661 = vperm.xlu0 %1660, %v1606
        %v1662 = vpop.permute.xlu0 %1661
        %1663 = vset.pattern.permute.xlu0 0
        %1664 = vperm.xlu0 %1663, %v1607
        %v1665 = vpop.permute.xlu0 %1664
        %1666 = vset.pattern.permute.xlu0 0
        %1667 = vperm.xlu0 %1666, %v1608
        %v1668 = vpop.permute.xlu0 %1667
        %1669 = vset.pattern.permute.xlu0 0
        %1670 = vperm.xlu0 %1669, %v1609
        %v1671 = vpop.permute.xlu0 %1670
        %1672 = vset.pattern.permute.xlu0 0
        %1673 = vperm.xlu0 %1672, %v1610
        %v1674 = vpop.permute.xlu0 %1673
        %v1675 = vlaneseq
        %v1676 = vand.u32 %v1675, 127
        %v1677 = vlaneseq
        %v1678 = vshrl.u32 %v1677, 7
        %v1679 = vsub.s32 %v1676, %v1678
        %v1680 = vrot.slane %v1629, %v1679
        %v1681 = vadd.s32 %v1676, 4294967288
        %v1682 = vlaneseq
        %v1683 = vshrl.u32 %v1682, 7
        %v1684 = vsub.s32 %v1681, %v1683
        %v1685 = vrot.slane %v1632, %v1684
        %vm1686 = vcmask 130112
        %v1687 = vsel %vm1686, %v1685, %v1680
        %v1688 = vlaneseq
        %v1689 = vshrl.u32 %v1688, 7
        %v1690 = vsub.s32 %v1676, %v1689
        %v1691 = vrot.slane %v1635, %v1690
        %v1692 = vlaneseq
        %v1693 = vshrl.u32 %v1692, 7
        %v1694 = vsub.s32 %v1681, %v1693
        %v1695 = vrot.slane %v1638, %v1694
        %v1696 = vsel %vm1686, %v1695, %v1691
        %v1697 = vlaneseq
        %v1698 = vshrl.u32 %v1697, 7
        %v1699 = vsub.s32 %v1676, %v1698
        %v1700 = vrot.slane %v1641, %v1699
        %v1701 = vlaneseq
        %v1702 = vshrl.u32 %v1701, 7
        %v1703 = vsub.s32 %v1681, %v1702
        %v1704 = vrot.slane %v1644, %v1703
        %v1705 = vsel %vm1686, %v1704, %v1700
        %v1706 = vlaneseq
        %v1707 = vshrl.u32 %v1706, 7
        %v1708 = vsub.s32 %v1676, %v1707
        %v1709 = vrot.slane %v1647, %v1708
        %v1710 = vlaneseq
        %v1711 = vshrl.u32 %v1710, 7
        %v1712 = vsub.s32 %v1681, %v1711
        %v1713 = vrot.slane %v1650, %v1712
        %v1714 = vsel %vm1686, %v1713, %v1709
        %v1715 = vlaneseq
        %v1716 = vshrl.u32 %v1715, 7
        %v1717 = vsub.s32 %v1676, %v1716
        %v1718 = vrot.slane %v1653, %v1717
        %v1719 = vlaneseq
        %v1720 = vshrl.u32 %v1719, 7
        %v1721 = vsub.s32 %v1681, %v1720
        %v1722 = vrot.slane %v1656, %v1721
        %v1723 = vsel %vm1686, %v1722, %v1718
        %v1724 = vlaneseq
        %v1725 = vshrl.u32 %v1724, 7
        %v1726 = vsub.s32 %v1676, %v1725
        %v1727 = vrot.slane %v1659, %v1726
        %v1728 = vlaneseq
        %v1729 = vshrl.u32 %v1728, 7
        %v1730 = vsub.s32 %v1681, %v1729
        %v1731 = vrot.slane %v1662, %v1730
        %v1732 = vsel %vm1686, %v1731, %v1727
        %v1733 = vlaneseq
        %v1734 = vshrl.u32 %v1733, 7
        %v1735 = vsub.s32 %v1676, %v1734
        %v1736 = vrot.slane %v1665, %v1735
        %v1737 = vlaneseq
        %v1738 = vshrl.u32 %v1737, 7
        %v1739 = vsub.s32 %v1681, %v1738
        %v1740 = vrot.slane %v1668, %v1739
        %v1741 = vsel %vm1686, %v1740, %v1736
        %v1742 = vlaneseq
        %v1743 = vshrl.u32 %v1742, 7
        %v1744 = vsub.s32 %v1676, %v1743
        %v1745 = vrot.slane %v1671, %v1744
        %v1746 = vlaneseq
        %v1747 = vshrl.u32 %v1746, 7
        %v1748 = vsub.s32 %v1681, %v1747
        %v1749 = vrot.slane %v1674, %v1748
        %v1750 = vsel %vm1686, %v1749, %v1745
        %vm1751 = vcmask 1041409
        %v1752 = vsel %vm1751, %v1696, %v1687
        %vm1753 = vcmask 1042434
        %v1754 = vsel %vm1753, %v1705, %v1752
        %vm1755 = vcmask 1043459
        %v1756 = vsel %vm1755, %v1714, %v1754
        %vm1757 = vcmask 1044484
        %v1758 = vsel %vm1757, %v1723, %v1756
        %vm1759 = vcmask 1045509
        %v1760 = vsel %vm1759, %v1732, %v1758
        %vm1761 = vcmask 1046534
        %v1762 = vsel %vm1761, %v1741, %v1760
        %vm1763 = vcmask 1047559
        %v1764 = vsel %vm1763, %v1750, %v1762
        %1766 = vst.msk [vmem:[%s647] sm:$0xff] %vm686, %v1764
        %s1767 = sld [smem:[#allocation20 + $0x80]]
        %s1768 = sld [smem:[#allocation20 + $0x81]]
        %s1769 = sld [smem:[#allocation20 + $0x82]]
        %v1770 = vstv %s1767
        %v1771 = vmul.f32 %v790, %v1770
        %v1772 = vmul.f32 %v791, %v1770
        %v1773 = vstv %s1768
        %v1774 = vmul.f32 %v790, %v1773
        %v1775 = vmul.f32 %v791, %v1773
        %v1776 = vstv %s1769
        %v1777 = vmul.f32 %v790, %v1776
        %v1778 = vmul.f32 %v791, %v1776
        %v1779 = vld [vmem:[%s8] sm:$0xff]
        %v1780 = vld [vmem:[%s8 + $0x8] sm:$0xff]
        %1782 = vset.pattern.permute.xlu0 8
        %1783 = vperm.xlu0 %1782, %v1771
        %v1784 = vpop.permute.xlu0 %1783
        %1787 = vset.pattern.permute.xlu0 8
        %1788 = vperm.xlu0 %1787, %v1772
        %v1789 = vpop.permute.xlu0 %1788
        %v1791 = vmul.f32 %v1784, %v1779
        %v1792 = vmul.f32 %v1789, %v1780
        %1795 = vrot.lane.b32.xlu0 %v1777, 120
        %v1796 = vpop.permute.xlu0 %1795
        %1797 = vrot.lane.b32.xlu0 %v1778, 120
        %v1798 = vpop.permute.xlu0 %1797
        %1799 = vrot.lane.b32.xlu0 %v790, 116
        %v1800 = vpop.permute.xlu0 %1799
        %1801 = vrot.lane.b32.xlu0 %v791, 116
        %v1802 = vpop.permute.xlu0 %1801
        %v1803 = vsel %vm963, %v1796, 0
        %v1805 = vsel %vm963, %v1798, 0
        %v1807 = vsel %vm963, %v1800, 0
        %v1809 = vsel %vm963, %v1802, 0
        %1811 = vmatprep.subr.mxu0 0.0
        %1812 = vmatpush1.xpose.msra.mxu0 %v1807
        %1813 = vmatprep.subr.mxu0 0.0
        %1814 = vmatpush1.xpose.msra.mxu0 %v1809
        %1815 = vmatprep.subr.mxu0 0.0
        %1816 = vmatpush1.xpose.msra.mxu0 0.0
        %1817 = vmatprep.subr.mxu0 0.0
        %1818 = vmatpush1.xpose.msra.mxu0 0.0
        %1819 = vmatprep.subr.mxu0 0.0
        %1820 = vmatpush1.xpose.msra.mxu0 0.0
        %1821 = vmatprep.subr.mxu0 0.0
        %1822 = vmatpush1.xpose.msra.mxu0 0.0
        %1823 = vmatprep.subr.mxu0 0.0
        %1824 = vmatpush1.xpose.msra.mxu0 0.0
        %1825 = vmatprep.subr.mxu0 0.0
        %1826 = vmatpush1.xpose.msra.mxu0 0.0
        %1827 = vmatprep.subr.mxu0 0.0
        %1828 = vmatpush1.xpose.msra.mxu0 0.0
        %1829 = vmatprep.subr.mxu0 0.0
        %1830 = vmatpush1.xpose.msra.mxu0 0.0
        %1831 = vmatprep.subr.mxu0 0.0
        %1832 = vmatpush1.xpose.msra.mxu0 0.0
        %1833 = vmatprep.subr.mxu0 0.0
        %1834 = vmatpush1.xpose.msra.mxu0 0.0
        %1835 = vmatprep.subr.mxu0 0.0
        %1836 = vmatpush1.xpose.msra.mxu0 0.0
        %1837 = vmatprep.subr.mxu0 0.0
        %1838 = vmatpush1.xpose.msra.mxu0 0.0
        %1839 = vmatprep.subr.mxu0 0.0
        %1840 = vmatpush1.xpose.msra.mxu0 0.0
        %1841 = vmatprep.subr.mxu0 0.0
        %1842 = vmatpush1.xpose.msra.mxu0 0.0
        %1843 = vmatprep.subr.mxu0 0.0
        %1844 = vmatpush1.xpose.msra.mxu0 0.0
        %1845 = vmatprep.subr.mxu0 0.0
        %1846 = vmatpush1.xpose.msra.mxu0 0.0
        %1847 = vmatprep.subr.mxu0 0.0
        %1848 = vmatpush1.xpose.msra.mxu0 0.0
        %1849 = vmatprep.subr.mxu0 0.0
        %1850 = vmatpush1.xpose.msra.mxu0 0.0
        %1851 = vmatprep.subr.mxu0 0.0
        %1852 = vmatpush1.xpose.msra.mxu0 0.0
        %1853 = vmatprep.subr.mxu0 0.0
        %1854 = vmatpush1.xpose.msra.mxu0 0.0
        %1855 = vmatprep.subr.mxu0 0.0
        %1856 = vmatpush1.xpose.msra.mxu0 0.0
        %1857 = vmatprep.subr.mxu0 0.0
        %1858 = vmatpush1.xpose.msra.mxu0 0.0
        %1859 = vmatprep.subr.mxu0 0.0
        %1860 = vmatpush1.xpose.msra.mxu0 0.0
        %1861 = vmatprep.subr.mxu0 0.0
        %1862 = vmatpush1.xpose.msra.mxu0 0.0
        %1863 = vmatprep.subr.mxu0 0.0
        %1864 = vmatpush1.xpose.msra.mxu0 0.0
        %1865 = vmatprep.subr.mxu0 0.0
        %1866 = vmatpush1.xpose.msra.mxu0 0.0
        %1867 = vmatprep.subr.mxu0 0.0
        %1868 = vmatpush1.xpose.msra.mxu0 0.0
        %1869 = vmatprep.subr.mxu0 0.0
        %1870 = vmatpush1.xpose.msra.mxu0 0.0
        %1871 = vmatprep.subr.mxu0 0.0
        %1872 = vmatpush1.xpose.msra.mxu0 0.0
        %1873 = vmatprep.subr.mxu0 0.0
        %1874 = vmatpush1.xpose.msra.mxu0 0.0
        %1875 = vmatprep.mubr.f32.mxu0 0.0
        %1876 = vmatmul.mubr.f32.gmra.mrb[0].mxu0 %v1803
        %v1877 = vpop.f32.mrb[0].mxu0
        %v1878 = vadd.f32 %v1791, %v1877
        %v1879 = vpop.f32.mrb[0].mxu0
        %1880 = vmatprep.mubr.f32.mxu0 0.0
        %1881 = vmatmul.mubr.f32.gmra.mrb[0].mxu0 %v1805
        %v1882 = vpop.f32.mrb[0].mxu0
        %v1883 = vadd.f32 %v1792, %v1882
        %v1884 = vpop.f32.mrb[0].mxu0
        %1885 = vdwg.mxu0
        %v1886 = vld [vmem:[#allocation17] sm:$0xff]
        %v1887 = vld [vmem:[#allocation17 + $0x8] sm:$0xff]
        %1889 = vset.pattern.permute.xlu0 12
        %1890 = vperm.xlu0 %1889, %v1774
        %v1891 = vpop.permute.xlu0 %1890
        %1894 = vset.pattern.permute.xlu0 12
        %1895 = vperm.xlu0 %1894, %v1775
        %v1896 = vpop.permute.xlu0 %1895
        %v1898 = vmul.f32 %v1891, %v1886
        %v1899 = vmul.f32 %v1896, %v1887
        %v1900 = vadd.f32 %v1878, %v1898
        %v1901 = vadd.f32 %v1883, %v1899
        %v1902 = vld [vmem:[%s1065] sm:$0xff]
        %v1903 = vld [vmem:[%s1065 + $0x8] sm:$0xff]
        %1904 = vset.pattern.permute.xlu0 9
        %1905 = vperm.xlu0 %1904, %v1771
        %v1906 = vpop.permute.xlu0 %1905
        %1908 = vset.pattern.permute.xlu0 9
        %1909 = vperm.xlu0 %1908, %v1772
        %v1910 = vpop.permute.xlu0 %1909
        %v1912 = vmul.f32 %v1906, %v1902
        %v1913 = vmul.f32 %v1910, %v1903
        %v1914 = vadd.f32 %v1900, %v1912
        %v1915 = vadd.f32 %v1901, %v1913
        %v1916 = vld [vmem:[%s1080] sm:$0xff]
        %v1917 = vld [vmem:[%s1080 + $0x8] sm:$0xff]
        %1918 = vset.pattern.permute.xlu0 13
        %1919 = vperm.xlu0 %1918, %v1774
        %v1920 = vpop.permute.xlu0 %1919
        %1922 = vset.pattern.permute.xlu0 13
        %1923 = vperm.xlu0 %1922, %v1775
        %v1924 = vpop.permute.xlu0 %1923
        %v1926 = vmul.f32 %v1920, %v1916
        %v1927 = vmul.f32 %v1924, %v1917
        %v1928 = vadd.f32 %v1914, %v1926
        %v1929 = vadd.f32 %v1915, %v1927
        %v1930 = vld [vmem:[%s1095] sm:$0xff]
        %v1931 = vld [vmem:[%s1095 + $0x8] sm:$0xff]
        %1932 = vset.pattern.permute.xlu0 10
        %1933 = vperm.xlu0 %1932, %v1771
        %v1934 = vpop.permute.xlu0 %1933
        %1936 = vset.pattern.permute.xlu0 10
        %1937 = vperm.xlu0 %1936, %v1772
        %v1938 = vpop.permute.xlu0 %1937
        %v1940 = vmul.f32 %v1934, %v1930
        %v1941 = vmul.f32 %v1938, %v1931
        %v1942 = vadd.f32 %v1928, %v1940
        %v1943 = vadd.f32 %v1929, %v1941
        %v1944 = vld [vmem:[%s1110] sm:$0xff]
        %v1945 = vld [vmem:[%s1110 + $0x8] sm:$0xff]
        %1946 = vset.pattern.permute.xlu0 14
        %1947 = vperm.xlu0 %1946, %v1774
        %v1948 = vpop.permute.xlu0 %1947
        %1950 = vset.pattern.permute.xlu0 14
        %1951 = vperm.xlu0 %1950, %v1775
        %v1952 = vpop.permute.xlu0 %1951
        %v1954 = vmul.f32 %v1948, %v1944
        %v1955 = vmul.f32 %v1952, %v1945
        %v1956 = vadd.f32 %v1942, %v1954
        %v1957 = vadd.f32 %v1943, %v1955
        %v1958 = vld [vmem:[%s1125] sm:$0xff]
        %v1959 = vld [vmem:[%s1125 + $0x8] sm:$0xff]
        %1960 = vset.pattern.permute.xlu0 11
        %1961 = vperm.xlu0 %1960, %v1771
        %v1962 = vpop.permute.xlu0 %1961
        %1964 = vset.pattern.permute.xlu0 11
        %1965 = vperm.xlu0 %1964, %v1772
        %v1966 = vpop.permute.xlu0 %1965
        %v1968 = vmul.f32 %v1962, %v1958
        %v1969 = vmul.f32 %v1966, %v1959
        %v1970 = vadd.f32 %v1956, %v1968
        %v1971 = vadd.f32 %v1957, %v1969
        %v1972 = vld [vmem:[%s1140] sm:$0xff]
        %v1973 = vld [vmem:[%s1140 + $0x8] sm:$0xff]
        %1974 = vset.pattern.permute.xlu0 15
        %1975 = vperm.xlu0 %1974, %v1774
        %v1976 = vpop.permute.xlu0 %1975
        %1978 = vset.pattern.permute.xlu0 15
        %1979 = vperm.xlu0 %1978, %v1775
        %v1980 = vpop.permute.xlu0 %1979
        %v1982 = vmul.f32 %v1976, %v1972
        %v1983 = vmul.f32 %v1980, %v1973
        %v1984 = vadd.f32 %v1970, %v1982
        %v1985 = vadd.f32 %v1971, %v1983
        %v1986 = vsel %vm686, %v1984, -inf
        %1987 = vmax.xlane.f32.xlu0 %v1986
        %v1988 = vpop.xlane.xlu0 %1987
        %v1989 = vsel %vm686, %v1985, -inf
        %1990 = vmax.xlane.f32.xlu0 %v1989
        %v1991 = vpop.xlane.xlu0 %1990
        %v1992 = vsub.f32 %v1984, %v1988
        %v1993 = vsub.f32 %v1985, %v1991
        %v1994 = vmul.f32 %v1992, 1.442695
        %v1995 = vpow.pop %v1994
        %v1996 = vmul.f32 %v1993, 1.442695
        %v1997 = vpow.pop %v1996
        %v1998 = vsel %vm686, %v1995, 0.0
        %1999 = vadd.xlane.f32.xlu0 %v1998
        %v2000 = vpop.xlane.xlu0 %1999
        %v2001 = vsel %vm686, %v1997, 0.0
        %2002 = vadd.xlane.f32.xlu0 %v2001
        %v2003 = vpop.xlane.xlu0 %2002
        %v2004 = vrcp.pop %v2000
        %v2005 = vrcp.pop %v2003
        %v2006 = vmul.f32 %v1995, %v2004
        %v2007 = vmul.f32 %v1997, %v2005
        %2010 = vrot.lane.b32.xlu0 %v929, 120
        %v2011 = vpop.permute.xlu0 %2010
        %2012 = vrot.lane.b32.xlu0 %v930, 120
        %v2013 = vpop.permute.xlu0 %2012
        %2016 = vxpose.xlu0.b32.start [1/16] %v2011, 128
        %2017 = vxpose.xlu0.b32.cont [2/16] %v2013, 128
        %2018 = vxpose.xlu0.b32.cont [3/16] 0.0, 128
        %2019 = vxpose.xlu0.b32.cont [4/16] 0.0, 128
        %2020 = vxpose.xlu0.b32.cont [5/16] 0.0, 128
        %2021 = vxpose.xlu0.b32.cont [6/16] 0.0, 128
        %2022 = vxpose.xlu0.b32.cont [7/16] 0.0, 128
        %2023 = vxpose.xlu0.b32.cont [8/16] 0.0, 128
        %2024 = vxpose.xlu0.b32.cont [9/16] 0.0, 128
        %2025 = vxpose.xlu0.b32.cont [10/16] 0.0, 128
        %2026 = vxpose.xlu0.b32.cont [11/16] 0.0, 128
        %2027 = vxpose.xlu0.b32.cont [12/16] 0.0, 128
        %2028 = vxpose.xlu0.b32.cont [13/16] 0.0, 128
        %2029 = vxpose.xlu0.b32.cont [14/16] 0.0, 128
        %2030 = vxpose.xlu0.b32.cont [15/16] 0.0, 128
        %2031 = vxpose.xlu0.b32.end [16/16] 0.0, 128
        %v2032 = vpop.trf.xlu0
        %v2033 = vpop.trf.xlu0
        %v2034 = vpop.trf.xlu0
        %v2035 = vpop.trf.xlu0
        %v2036 = vpop.trf.xlu0
        %v2037 = vpop.trf.xlu0
        %v2038 = vpop.trf.xlu0
        %v2039 = vpop.trf.xlu0
        %v2040 = vpop.trf.xlu0
        %v2041 = vpop.trf.xlu0
        %v2042 = vpop.trf.xlu0
        %v2043 = vpop.trf.xlu0
        %v2044 = vpop.trf.xlu0
        %v2045 = vpop.trf.xlu0
        %v2046 = vpop.trf.xlu0
        %v2047 = vpop.trf.xlu0
        %v2049 = vsel %vm686, %v2032, 0
        %v2052 = vsel %vm686, %v2006, 0
        %v2055 = vsel %vm686, %v2007, 0
        %2057 = vmatprep.subr.mxu0 0.0
        %2058 = vmatpush1.xpose.msra.mxu0 %v2052
        %2059 = vmatprep.subr.mxu0 0.0
        %2060 = vmatpush1.xpose.msra.mxu0 %v2055
        %2061 = vmatprep.subr.mxu0 0.0
        %2062 = vmatpush1.xpose.msra.mxu0 0.0
        %2063 = vmatprep.subr.mxu0 0.0
        %2064 = vmatpush1.xpose.msra.mxu0 0.0
        %2065 = vmatprep.subr.mxu0 0.0
        %2066 = vmatpush1.xpose.msra.mxu0 0.0
        %2067 = vmatprep.subr.mxu0 0.0
        %2068 = vmatpush1.xpose.msra.mxu0 0.0
        %2069 = vmatprep.subr.mxu0 0.0
        %2070 = vmatpush1.xpose.msra.mxu0 0.0
        %2071 = vmatprep.subr.mxu0 0.0
        %2072 = vmatpush1.xpose.msra.mxu0 0.0
        %2073 = vmatprep.subr.mxu0 0.0
        %2074 = vmatpush1.xpose.msra.mxu0 0.0
        %2075 = vmatprep.subr.mxu0 0.0
        %2076 = vmatpush1.xpose.msra.mxu0 0.0
        %2077 = vmatprep.subr.mxu0 0.0
        %2078 = vmatpush1.xpose.msra.mxu0 0.0
        %2079 = vmatprep.subr.mxu0 0.0
        %2080 = vmatpush1.xpose.msra.mxu0 0.0
        %2081 = vmatprep.subr.mxu0 0.0
        %2082 = vmatpush1.xpose.msra.mxu0 0.0
        %2083 = vmatprep.subr.mxu0 0.0
        %2084 = vmatpush1.xpose.msra.mxu0 0.0
        %2085 = vmatprep.subr.mxu0 0.0
        %2086 = vmatpush1.xpose.msra.mxu0 0.0
        %2087 = vmatprep.subr.mxu0 0.0
        %2088 = vmatpush1.xpose.msra.mxu0 0.0
        %2089 = vmatprep.subr.mxu0 0.0
        %2090 = vmatpush1.xpose.msra.mxu0 0.0
        %2091 = vmatprep.subr.mxu0 0.0
        %2092 = vmatpush1.xpose.msra.mxu0 0.0
        %2093 = vmatprep.subr.mxu0 0.0
        %2094 = vmatpush1.xpose.msra.mxu0 0.0
        %2095 = vmatprep.subr.mxu0 0.0
        %2096 = vmatpush1.xpose.msra.mxu0 0.0
        %2097 = vmatprep.subr.mxu0 0.0
        %2098 = vmatpush1.xpose.msra.mxu0 0.0
        %2099 = vmatprep.subr.mxu0 0.0
        %2100 = vmatpush1.xpose.msra.mxu0 0.0
        %2101 = vmatprep.subr.mxu0 0.0
        %2102 = vmatpush1.xpose.msra.mxu0 0.0
        %2103 = vmatprep.subr.mxu0 0.0
        %2104 = vmatpush1.xpose.msra.mxu0 0.0
        %2105 = vmatprep.subr.mxu0 0.0
        %2106 = vmatpush1.xpose.msra.mxu0 0.0
        %2107 = vmatprep.subr.mxu0 0.0
        %2108 = vmatpush1.xpose.msra.mxu0 0.0
        %2109 = vmatprep.subr.mxu0 0.0
        %2110 = vmatpush1.xpose.msra.mxu0 0.0
        %2111 = vmatprep.subr.mxu0 0.0
        %2112 = vmatpush1.xpose.msra.mxu0 0.0
        %2113 = vmatprep.subr.mxu0 0.0
        %2114 = vmatpush1.xpose.msra.mxu0 0.0
        %2115 = vmatprep.subr.mxu0 0.0
        %2116 = vmatpush1.xpose.msra.mxu0 0.0
        %2117 = vmatprep.subr.mxu0 0.0
        %2118 = vmatpush1.xpose.msra.mxu0 0.0
        %2119 = vmatprep.subr.mxu0 0.0
        %2120 = vmatpush1.xpose.msra.mxu0 0.0
        %2121 = vmatprep.mubr.f32.mxu0 0.0
        %2122 = vmatmul.mubr.f32.gmra.mrb[0].mxu0 %v2049
        %v2123 = vpop.f32.mrb[0].mxu0
        %v2124 = vadd.f32 0.0, %v2123
        %v2125 = vpop.f32.mrb[0].mxu0
        %2126 = vdwg.mxu0
        %v2127 = vld [vmem:[#allocation18] sm:$0xff]
        %v2128 = vld [vmem:[#allocation18 + $0x8] sm:$0xff]
        %v2129 = vld [vmem:[#allocation18 + $0x10] sm:$0xff]
        %v2130 = vld [vmem:[#allocation18 + $0x18] sm:$0xff]
        %v2131 = vld [vmem:[#allocation18 + $0x20] sm:$0xff]
        %v2132 = vld [vmem:[#allocation18 + $0x28] sm:$0xff]
        %v2133 = vld [vmem:[#allocation18 + $0x30] sm:$0xff]
        %v2134 = vld [vmem:[#allocation18 + $0x38] sm:$0xff]
        %v2135 = vld [vmem:[#allocation18 + $0x40] sm:$0xff]
        %v2136 = vld [vmem:[#allocation18 + $0x48] sm:$0xff]
        %v2137 = vld [vmem:[#allocation18 + $0x50] sm:$0xff]
        %v2138 = vld [vmem:[#allocation18 + $0x58] sm:$0xff]
        %v2139 = vld [vmem:[#allocation18 + $0x60] sm:$0xff]
        %v2140 = vld [vmem:[#allocation18 + $0x68] sm:$0xff]
        %v2141 = vld [vmem:[#allocation18 + $0x70] sm:$0xff]
        %v2142 = vld [vmem:[#allocation18 + $0x78] sm:$0xff]
        %v2143 = vmul.f32 %v2006, %v2127
        %v2144 = vmul.f32 %v2007, %v2128
        %v2145 = vmul.f32 %v2006, %v2129
        %v2146 = vmul.f32 %v2007, %v2130
        %v2147 = vmul.f32 %v2006, %v2131
        %v2148 = vmul.f32 %v2007, %v2132
        %v2149 = vmul.f32 %v2006, %v2133
        %v2150 = vmul.f32 %v2007, %v2134
        %v2151 = vmul.f32 %v2006, %v2135
        %v2152 = vmul.f32 %v2007, %v2136
        %v2153 = vmul.f32 %v2006, %v2137
        %v2154 = vmul.f32 %v2007, %v2138
        %v2155 = vmul.f32 %v2006, %v2139
        %v2156 = vmul.f32 %v2007, %v2140
        %v2157 = vmul.f32 %v2006, %v2141
        %v2158 = vmul.f32 %v2007, %v2142
        %v2159 = vsel %vm686, %v2143, 0.0
        %2160 = vadd.xlane.f32.xlu0 %v2159
        %v2161 = vpop.xlane.xlu0 %2160
        %v2162 = vsel %vm686, %v2144, 0.0
        %2163 = vadd.xlane.f32.xlu0 %v2162
        %v2164 = vpop.xlane.xlu0 %2163
        %v2165 = vsel %vm686, %v2145, 0.0
        %2166 = vadd.xlane.f32.xlu0 %v2165
        %v2167 = vpop.xlane.xlu0 %2166
        %v2168 = vsel %vm686, %v2146, 0.0
        %2169 = vadd.xlane.f32.xlu0 %v2168
        %v2170 = vpop.xlane.xlu0 %2169
        %v2171 = vsel %vm686, %v2147, 0.0
        %2172 = vadd.xlane.f32.xlu0 %v2171
        %v2173 = vpop.xlane.xlu0 %2172
        %v2174 = vsel %vm686, %v2148, 0.0
        %2175 = vadd.xlane.f32.xlu0 %v2174
        %v2176 = vpop.xlane.xlu0 %2175
        %v2177 = vsel %vm686, %v2149, 0.0
        %2178 = vadd.xlane.f32.xlu0 %v2177
        %v2179 = vpop.xlane.xlu0 %2178
        %v2180 = vsel %vm686, %v2150, 0.0
        %2181 = vadd.xlane.f32.xlu0 %v2180
        %v2182 = vpop.xlane.xlu0 %2181
        %v2183 = vsel %vm686, %v2151, 0.0
        %2184 = vadd.xlane.f32.xlu0 %v2183
        %v2185 = vpop.xlane.xlu0 %2184
        %v2186 = vsel %vm686, %v2152, 0.0
        %2187 = vadd.xlane.f32.xlu0 %v2186
        %v2188 = vpop.xlane.xlu0 %2187
        %v2189 = vsel %vm686, %v2153, 0.0
        %2190 = vadd.xlane.f32.xlu0 %v2189
        %v2191 = vpop.xlane.xlu0 %2190
        %v2192 = vsel %vm686, %v2154, 0.0
        %2193 = vadd.xlane.f32.xlu0 %v2192
        %v2194 = vpop.xlane.xlu0 %2193
        %v2195 = vsel %vm686, %v2155, 0.0
        %2196 = vadd.xlane.f32.xlu0 %v2195
        %v2197 = vpop.xlane.xlu0 %2196
        %v2198 = vsel %vm686, %v2156, 0.0
        %2199 = vadd.xlane.f32.xlu0 %v2198
        %v2200 = vpop.xlane.xlu0 %2199
        %v2201 = vsel %vm686, %v2157, 0.0
        %2202 = vadd.xlane.f32.xlu0 %v2201
        %v2203 = vpop.xlane.xlu0 %2202
        %v2204 = vsel %vm686, %v2158, 0.0
        %2205 = vadd.xlane.f32.xlu0 %v2204
        %v2206 = vpop.xlane.xlu0 %2205
        %v2207 = vld [vmem:[%s12 + $0x8] sm:$0xff]
        %2209 = vset.pattern.permute.xlu0 0
        %2210 = vperm.xlu0 %2209, %v2207
        %v2211 = vpop.permute.xlu0 %2210
        %v2212 = vlaneseq
        %v2213 = vshrl.u32 %v2212, 7
        %v2214 = vsub.s32 0, %v2213
        %v2215 = vrot.slane %v2211, %v2214
        %v2216 = vlaneseq
        %v2217 = vshrl.u32 %v2216, 7
        %v2218 = vsub.s32 1, %v2217
        %v2219 = vrot.slane %v2211, %v2218
        %v2220 = vlaneseq
        %v2221 = vshrl.u32 %v2220, 7
        %v2222 = vsub.s32 2, %v2221
        %v2223 = vrot.slane %v2211, %v2222
        %v2224 = vlaneseq
        %v2225 = vshrl.u32 %v2224, 7
        %v2226 = vsub.s32 3, %v2225
        %v2227 = vrot.slane %v2211, %v2226
        %v2228 = vlaneseq
        %v2229 = vshrl.u32 %v2228, 7
        %v2230 = vsub.s32 4, %v2229
        %v2231 = vrot.slane %v2211, %v2230
        %v2232 = vlaneseq
        %v2233 = vshrl.u32 %v2232, 7
        %v2234 = vsub.s32 5, %v2233
        %v2235 = vrot.slane %v2211, %v2234
        %v2236 = vlaneseq
        %v2237 = vshrl.u32 %v2236, 7
        %v2238 = vsub.s32 6, %v2237
        %v2239 = vrot.slane %v2211, %v2238
        %v2240 = vlaneseq
        %v2241 = vshrl.u32 %v2240, 7
        %v2242 = vsub.s32 7, %v2241
        %v2243 = vrot.slane %v2211, %v2242
        %v2252 = vmul.f32 %v2161, %v2215
        %v2253 = vmul.f32 %v2164, %v2215
        %v2254 = vmul.f32 %v2167, %v2219
        %v2255 = vmul.f32 %v2170, %v2219
        %v2256 = vmul.f32 %v2173, %v2223
        %v2257 = vmul.f32 %v2176, %v2223
        %v2258 = vmul.f32 %v2179, %v2227
        %v2259 = vmul.f32 %v2182, %v2227
        %v2260 = vmul.f32 %v2185, %v2231
        %v2261 = vmul.f32 %v2188, %v2231
        %v2262 = vmul.f32 %v2191, %v2235
        %v2263 = vmul.f32 %v2194, %v2235
        %v2264 = vmul.f32 %v2197, %v2239
        %v2265 = vmul.f32 %v2200, %v2239
        %v2266 = vmul.f32 %v2203, %v2243
        %v2267 = vmul.f32 %v2206, %v2243
        %v2269 = vlaneseq
        %v2270 = vshrl.u32 %v2269, 7
        %v2271 = vsub.s32 0, %v2270
        %v2272 = vrot.slane %v2124, %v2271
        %2274 = vbcast.lane.b32.xlu0 %v2272, 256
        %v2275 = vpop.permute.xlu0 %2274
        %s2277 = sor.u32 256, 8
        %2278 = vbcast.lane.b32.xlu0 %v2272, %s2277
        %v2279 = vpop.permute.xlu0 %2278
        %v2280 = vlaneseq
        %v2281 = vshrl.u32 %v2280, 7
        %v2282 = vsub.s32 1, %v2281
        %v2283 = vrot.slane %v2124, %v2282
        %2285 = vbcast.lane.b32.xlu0 %v2283, 256
        %v2286 = vpop.permute.xlu0 %2285
        %s2288 = sor.u32 256, 8
        %2289 = vbcast.lane.b32.xlu0 %v2283, %s2288
        %v2290 = vpop.permute.xlu0 %2289
        %v2291 = vlaneseq
        %v2292 = vshrl.u32 %v2291, 7
        %v2293 = vsub.s32 2, %v2292
        %v2294 = vrot.slane %v2124, %v2293
        %2296 = vbcast.lane.b32.xlu0 %v2294, 256
        %v2297 = vpop.permute.xlu0 %2296
        %s2299 = sor.u32 256, 8
        %2300 = vbcast.lane.b32.xlu0 %v2294, %s2299
        %v2301 = vpop.permute.xlu0 %2300
        %v2302 = vlaneseq
        %v2303 = vshrl.u32 %v2302, 7
        %v2304 = vsub.s32 3, %v2303
        %v2305 = vrot.slane %v2124, %v2304
        %2307 = vbcast.lane.b32.xlu0 %v2305, 256
        %v2308 = vpop.permute.xlu0 %2307
        %s2310 = sor.u32 256, 8
        %2311 = vbcast.lane.b32.xlu0 %v2305, %s2310
        %v2312 = vpop.permute.xlu0 %2311
        %v2313 = vlaneseq
        %v2314 = vshrl.u32 %v2313, 7
        %v2315 = vsub.s32 4, %v2314
        %v2316 = vrot.slane %v2124, %v2315
        %2318 = vbcast.lane.b32.xlu0 %v2316, 256
        %v2319 = vpop.permute.xlu0 %2318
        %s2321 = sor.u32 256, 8
        %2322 = vbcast.lane.b32.xlu0 %v2316, %s2321
        %v2323 = vpop.permute.xlu0 %2322
        %v2324 = vlaneseq
        %v2325 = vshrl.u32 %v2324, 7
        %v2326 = vsub.s32 5, %v2325
        %v2327 = vrot.slane %v2124, %v2326
        %2329 = vbcast.lane.b32.xlu0 %v2327, 256
        %v2330 = vpop.permute.xlu0 %2329
        %s2332 = sor.u32 256, 8
        %2333 = vbcast.lane.b32.xlu0 %v2327, %s2332
        %v2334 = vpop.permute.xlu0 %2333
        %v2335 = vlaneseq
        %v2336 = vshrl.u32 %v2335, 7
        %v2337 = vsub.s32 6, %v2336
        %v2338 = vrot.slane %v2124, %v2337
        %2340 = vbcast.lane.b32.xlu0 %v2338, 256
        %v2341 = vpop.permute.xlu0 %2340
        %s2343 = sor.u32 256, 8
        %2344 = vbcast.lane.b32.xlu0 %v2338, %s2343
        %v2345 = vpop.permute.xlu0 %2344
        %v2346 = vlaneseq
        %v2347 = vshrl.u32 %v2346, 7
        %v2348 = vsub.s32 7, %v2347
        %v2349 = vrot.slane %v2124, %v2348
        %2351 = vbcast.lane.b32.xlu0 %v2349, 256
        %v2352 = vpop.permute.xlu0 %2351
        %s2354 = sor.u32 256, 8
        %2355 = vbcast.lane.b32.xlu0 %v2349, %s2354
        %v2356 = vpop.permute.xlu0 %2355
        %v2373 = vadd.f32 %v2252, %v2275
        %v2374 = vadd.f32 %v2253, %v2279
        %v2375 = vadd.f32 %v2254, %v2286
        %v2376 = vadd.f32 %v2255, %v2290
        %v2377 = vadd.f32 %v2256, %v2297
        %v2378 = vadd.f32 %v2257, %v2301
        %v2379 = vadd.f32 %v2258, %v2308
        %v2380 = vadd.f32 %v2259, %v2312
        %v2381 = vadd.f32 %v2260, %v2319
        %v2382 = vadd.f32 %v2261, %v2323
        %v2383 = vadd.f32 %v2262, %v2330
        %v2384 = vadd.f32 %v2263, %v2334
        %v2385 = vadd.f32 %v2264, %v2341
        %v2386 = vadd.f32 %v2265, %v2345
        %v2387 = vadd.f32 %v2266, %v2352
        %v2388 = vadd.f32 %v2267, %v2356
        %v2389 = vld [vmem:[%s13 + $0x8] sm:$0xff]
        %2391 = vset.pattern.permute.xlu0 0
        %2392 = vperm.xlu0 %2391, %v2389
        %v2393 = vpop.permute.xlu0 %2392
        %v2394 = vlaneseq
        %v2395 = vshrl.u32 %v2394, 7
        %v2396 = vsub.s32 0, %v2395
        %v2397 = vrot.slane %v2393, %v2396
        %v2398 = vlaneseq
        %v2399 = vshrl.u32 %v2398, 7
        %v2400 = vsub.s32 1, %v2399
        %v2401 = vrot.slane %v2393, %v2400
        %v2402 = vlaneseq
        %v2403 = vshrl.u32 %v2402, 7
        %v2404 = vsub.s32 2, %v2403
        %v2405 = vrot.slane %v2393, %v2404
        %v2406 = vlaneseq
        %v2407 = vshrl.u32 %v2406, 7
        %v2408 = vsub.s32 3, %v2407
        %v2409 = vrot.slane %v2393, %v2408
        %v2410 = vlaneseq
        %v2411 = vshrl.u32 %v2410, 7
        %v2412 = vsub.s32 4, %v2411
        %v2413 = vrot.slane %v2393, %v2412
        %v2414 = vlaneseq
        %v2415 = vshrl.u32 %v2414, 7
        %v2416 = vsub.s32 5, %v2415
        %v2417 = vrot.slane %v2393, %v2416
        %v2418 = vlaneseq
        %v2419 = vshrl.u32 %v2418, 7
        %v2420 = vsub.s32 6, %v2419
        %v2421 = vrot.slane %v2393, %v2420
        %v2422 = vlaneseq
        %v2423 = vshrl.u32 %v2422, 7
        %v2424 = vsub.s32 7, %v2423
        %v2425 = vrot.slane %v2393, %v2424
        %v2434 = vadd.f32 %v2373, %v2397
        %v2435 = vadd.f32 %v2374, %v2397
        %v2436 = vadd.f32 %v2375, %v2401
        %v2437 = vadd.f32 %v2376, %v2401
        %v2438 = vadd.f32 %v2377, %v2405
        %v2439 = vadd.f32 %v2378, %v2405
        %v2440 = vadd.f32 %v2379, %v2409
        %v2441 = vadd.f32 %v2380, %v2409
        %v2442 = vadd.f32 %v2381, %v2413
        %v2443 = vadd.f32 %v2382, %v2413
        %v2444 = vadd.f32 %v2383, %v2417
        %v2445 = vadd.f32 %v2384, %v2417
        %v2446 = vadd.f32 %v2385, %v2421
        %v2447 = vadd.f32 %v2386, %v2421
        %v2448 = vadd.f32 %v2387, %v2425
        %v2449 = vadd.f32 %v2388, %v2425
        %2466 = vset.pattern.permute.xlu0 0
        %2467 = vperm.xlu0 %2466, %v2434
        %v2468 = vpop.permute.xlu0 %2467
        %2469 = vset.pattern.permute.xlu0 0
        %2470 = vperm.xlu0 %2469, %v2435
        %v2471 = vpop.permute.xlu0 %2470
        %2472 = vset.pattern.permute.xlu0 0
        %2473 = vperm.xlu0 %2472, %v2436
        %v2474 = vpop.permute.xlu0 %2473
        %2475 = vset.pattern.permute.xlu0 0
        %2476 = vperm.xlu0 %2475, %v2437
        %v2477 = vpop.permute.xlu0 %2476
        %2478 = vset.pattern.permute.xlu0 0
        %2479 = vperm.xlu0 %2478, %v2438
        %v2480 = vpop.permute.xlu0 %2479
        %2481 = vset.pattern.permute.xlu0 0
        %2482 = vperm.xlu0 %2481, %v2439
        %v2483 = vpop.permute.xlu0 %2482
        %2484 = vset.pattern.permute.xlu0 0
        %2485 = vperm.xlu0 %2484, %v2440
        %v2486 = vpop.permute.xlu0 %2485
        %2487 = vset.pattern.permute.xlu0 0
        %2488 = vperm.xlu0 %2487, %v2441
        %v2489 = vpop.permute.xlu0 %2488
        %2490 = vset.pattern.permute.xlu0 0
        %2491 = vperm.xlu0 %2490, %v2442
        %v2492 = vpop.permute.xlu0 %2491
        %2493 = vset.pattern.permute.xlu0 0
        %2494 = vperm.xlu0 %2493, %v2443
        %v2495 = vpop.permute.xlu0 %2494
        %2496 = vset.pattern.permute.xlu0 0
        %2497 = vperm.xlu0 %2496, %v2444
        %v2498 = vpop.permute.xlu0 %2497
        %2499 = vset.pattern.permute.xlu0 0
        %2500 = vperm.xlu0 %2499, %v2445
        %v2501 = vpop.permute.xlu0 %2500
        %2502 = vset.pattern.permute.xlu0 0
        %2503 = vperm.xlu0 %2502, %v2446
        %v2504 = vpop.permute.xlu0 %2503
        %2505 = vset.pattern.permute.xlu0 0
        %2506 = vperm.xlu0 %2505, %v2447
        %v2507 = vpop.permute.xlu0 %2506
        %2508 = vset.pattern.permute.xlu0 0
        %2509 = vperm.xlu0 %2508, %v2448
        %v2510 = vpop.permute.xlu0 %2509
        %2511 = vset.pattern.permute.xlu0 0
        %2512 = vperm.xlu0 %2511, %v2449
        %v2513 = vpop.permute.xlu0 %2512
        %v2514 = vlaneseq
        %v2515 = vshrl.u32 %v2514, 7
        %v2516 = vsub.s32 %v1676, %v2515
        %v2517 = vrot.slane %v2468, %v2516
        %v2518 = vlaneseq
        %v2519 = vshrl.u32 %v2518, 7
        %v2520 = vsub.s32 %v1681, %v2519
        %v2521 = vrot.slane %v2471, %v2520
        %v2522 = vsel %vm1686, %v2521, %v2517
        %v2523 = vlaneseq
        %v2524 = vshrl.u32 %v2523, 7
        %v2525 = vsub.s32 %v1676, %v2524
        %v2526 = vrot.slane %v2474, %v2525
        %v2527 = vlaneseq
        %v2528 = vshrl.u32 %v2527, 7
        %v2529 = vsub.s32 %v1681, %v2528
        %v2530 = vrot.slane %v2477, %v2529
        %v2531 = vsel %vm1686, %v2530, %v2526
        %v2532 = vlaneseq
        %v2533 = vshrl.u32 %v2532, 7
        %v2534 = vsub.s32 %v1676, %v2533
        %v2535 = vrot.slane %v2480, %v2534
        %v2536 = vlaneseq
        %v2537 = vshrl.u32 %v2536, 7
        %v2538 = vsub.s32 %v1681, %v2537
        %v2539 = vrot.slane %v2483, %v2538
        %v2540 = vsel %vm1686, %v2539, %v2535
        %v2541 = vlaneseq
        %v2542 = vshrl.u32 %v2541, 7
        %v2543 = vsub.s32 %v1676, %v2542
        %v2544 = vrot.slane %v2486, %v2543
        %v2545 = vlaneseq
        %v2546 = vshrl.u32 %v2545, 7
        %v2547 = vsub.s32 %v1681, %v2546
        %v2548 = vrot.slane %v2489, %v2547
        %v2549 = vsel %vm1686, %v2548, %v2544
        %v2550 = vlaneseq
        %v2551 = vshrl.u32 %v2550, 7
        %v2552 = vsub.s32 %v1676, %v2551
        %v2553 = vrot.slane %v2492, %v2552
        %v2554 = vlaneseq
        %v2555 = vshrl.u32 %v2554, 7
        %v2556 = vsub.s32 %v1681, %v2555
        %v2557 = vrot.slane %v2495, %v2556
        %v2558 = vsel %vm1686, %v2557, %v2553
        %v2559 = vlaneseq
        %v2560 = vshrl.u32 %v2559, 7
        %v2561 = vsub.s32 %v1676, %v2560
        %v2562 = vrot.slane %v2498, %v2561
        %v2563 = vlaneseq
        %v2564 = vshrl.u32 %v2563, 7
        %v2565 = vsub.s32 %v1681, %v2564
        %v2566 = vrot.slane %v2501, %v2565
        %v2567 = vsel %vm1686, %v2566, %v2562
        %v2568 = vlaneseq
        %v2569 = vshrl.u32 %v2568, 7
        %v2570 = vsub.s32 %v1676, %v2569
        %v2571 = vrot.slane %v2504, %v2570
        %v2572 = vlaneseq
        %v2573 = vshrl.u32 %v2572, 7
        %v2574 = vsub.s32 %v1681, %v2573
        %v2575 = vrot.slane %v2507, %v2574
        %v2576 = vsel %vm1686, %v2575, %v2571
        %v2577 = vlaneseq
        %v2578 = vshrl.u32 %v2577, 7
        %v2579 = vsub.s32 %v1676, %v2578
        %v2580 = vrot.slane %v2510, %v2579
        %v2581 = vlaneseq
        %v2582 = vshrl.u32 %v2581, 7
        %v2583 = vsub.s32 %v1681, %v2582
        %v2584 = vrot.slane %v2513, %v2583
        %v2585 = vsel %vm1686, %v2584, %v2580
        %v2586 = vsel %vm1751, %v2531, %v2522
        %v2587 = vsel %vm1753, %v2540, %v2586
        %v2588 = vsel %vm1755, %v2549, %v2587
        %v2589 = vsel %vm1757, %v2558, %v2588
        %v2590 = vsel %vm1759, %v2567, %v2589
        %v2591 = vsel %vm1761, %v2576, %v2590
        %v2592 = vsel %vm1763, %v2585, %v2591
        %2594 = vst.msk [vmem:[%s647 + $0x8] sm:$0xff] %vm686, %v2592
        %s2595 = sand.u32 %s351, 1
        %s2596 = scalar_lea.sflag [#allocation4], %s2595
        %s2597 = sand.u32 %s351, 1
        %s2598 = smul.addr %s2597, 16
        %s2599 = scalar_lea.vmem [#allocation21], %s2598
        // Predicated region
        $region121: #{tpu_custom_call.1} parent=75 // pred_check
          %p2600 = pneg %p361
        $region122: #{tpu_custom_call.1} parent=75 // pred_check_branch
          %2602 = sbr.rel (%p2600) target = $region124
        $region123: #{tpu_custom_call.1} parent=75 // pred_region
          %s2604 = ssub.s32 256, 256
          %2605 = vsyncadd %s2596, %s2604
          %s2606 = smul.addr %s39, 2
          %s2607 = smul.addr %s2606, 128
          %s2608 = scalar_lea.hbm %s14, %s2607
          %s2609 = sshll.u32 %s2599, 4
          %s2610 = int_to_ptr.vmem [resolvable:$true] %s2609
          %2615 = dma.vmem_to_hbm [thread:$0]  %s2610, 256, %s2608, %s2596, 128, 128, 8
        $region124: #{tpu_custom_call.1} parent=75 // pred_fallthru
          _
      $region76: #{tpu_custom_call.1} parent=5 // pred_fallthru
        _
      %p2616 = scmp.le.s32.totalorder 2, %s34
      // Predicated region
      $region125: #{tpu_custom_call.1} parent=5 // pred_check
        %p2617 = pneg %p2616
      $region126: #{tpu_custom_call.1} parent=5 // pred_check_branch
        %2619 = sbr.rel (%p2617) target = $region128
      $region127: #{tpu_custom_call.1} parent=5 // pred_region
        %s2620 = ssub.s32 %s34, 2
        // Predicated region
        $region129: #{tpu_custom_call.1} parent=127 // pred_check
          %p2621 = pneg %p367
        $region130: #{tpu_custom_call.1} parent=127 // pred_check_branch
          %2623 = sbr.rel (%p2621) target = $region132
        $region131: #{tpu_custom_call.1} parent=127 // pred_region
          %s2624 = sand.u32 %s352, 1
          %s2625 = scalar_lea.sflag [#allocation4], %s2624
          %s2626 = sand.u32 %s352, 1
          %s2627 = smul.addr %s2626, 16
          %s2628 = scalar_lea.vmem [#allocation21], %s2627
          %2629 = dma.done %s2625, 256
        $region132: #{tpu_custom_call.1} parent=127 // pred_fallthru
          _
      $region128: #{tpu_custom_call.1} parent=5 // pred_fallthru
        _
    $region6: #{tpu_custom_call.1} parent=1 // loop_footer
      %s38 = sadd.s32 1, %s34
    $region7: #{tpu_custom_call.1} parent=1 // loop_footer_branch
      %33 = sbr.rel target = $region3
    $region8: #{tpu_custom_call.1} parent=1 // loop_exit
      _
    %2630 = vsyncpa [#allocation3], 1
    %s2631 = scalar_lea.sflag [#allocation3], 1
    %2632 = vsyncpa %s2631, 1
    %2633 = vsyncpa [#allocation7], 1
    %s2634 = scalar_lea.sflag [#allocation7], 1
    %2635 = vsyncpa %s2634, 1
    %2636 = vsyncpa [#allocation10], 1
    %2637 = vsyncpa [#allocation13], 1
    %2638 = vsyncpa [#allocation16], 1
    %2639 = vsyncpa [#allocation19], 1
    %2640 = vsyncpa [#allocation4], 1
    %s2641 = scalar_lea.sflag [#allocation4], 1
    %2642 = vsyncpa %s2641, 1
    %2643 = vsyncpa [#allocation5], 1
    %s2644 = scalar_lea.sflag [#allocation5], 1
    %2645 = vsyncpa %s2644, 1

</llo_original>
